<compile_context>
chip_gen: v7x
topology: tpu7x:2x2x1
jax: 0.10.0
libtpu: 0.0.40
codegen_flags: <defaults>
</compile_context>

<pallas_src>
import jax
import jax.numpy as jnp
from jax.experimental import pallas as pl
from jax.experimental.pallas import tpu as pltpu


def lstm_regressor_kernel(x_ref, h0_ref, c0_ref,
                          wih0_ref, whh0_ref, b0_ref,
                          w1_ref, b1_ref,
                          wlin_ref, blin_ref,
                          out_ref):
    Bp = h0_ref.shape[1]
    H = h0_ref.shape[-1]
    T = x_ref.shape[0] // Bp

    # ---- hoist all weights / biases out of the recurrence (loaded once) ----
    wih0 = wih0_ref[...]                                   # [I, 4H]
    whh0 = whh0_ref[...]                                   # [H, 4H]
    w1 = w1_ref[...]                                       # [2H, 4H]
    wlin = wlin_ref[...]                                   # [H, 1]
    b1b = jnp.broadcast_to(b1_ref[...], (Bp, 4 * H))       # broadcast once

    # ---- layer-0 input projection for ALL timesteps in one matmul ----
    # x_ref is [T*Bp, I]; result [T*Bp, 4H] with bias already folded in.
    xproj = (jnp.dot(x_ref[...], wih0, preferred_element_type=jnp.float32)
             + b0_ref[...])

    def gates_to_hc(gates, c):
        # full-vreg activations (128 lanes), then take 32-lane segments
        sig = jax.nn.sigmoid(gates)
        th = jnp.tanh(gates)
        i = sig[:, 0 * H:1 * H]
        f = sig[:, 1 * H:2 * H]
        g = th[:, 2 * H:3 * H]
        o = sig[:, 3 * H:4 * H]
        c_new = f * c + i * g
        h_new = o * jnp.tanh(c_new)
        return h_new, c_new

    h0 = h0_ref[0]
    c0 = c0_ref[0]
    h1 = h0_ref[1]
    c1 = c0_ref[1]

    # ---- fused two-layer recurrence, fully unrolled (T is compile-time) ----
    for t in range(T):
        # layer 0: only the recurrent matmul is on the serial chain
        g0 = xproj[t * Bp:(t + 1) * Bp, :] + jnp.dot(
            h0, whh0, preferred_element_type=jnp.float32)
        h0, c0 = gates_to_hc(g0, c0)

        # layer 1: single fused matmul over [h0_t | h1]
        xh = jnp.concatenate([h0, h1], axis=1)             # [Bp, 2H]
        g1 = jnp.dot(xh, w1, preferred_element_type=jnp.float32) + b1b
        h1, c1 = gates_to_hc(g1, c1)

    # ---- final linear head on output[:, -1] (same scheduled region) ----
    out_ref[...] = (jnp.dot(h1, wlin, preferred_element_type=jnp.float32)
                    + blin_ref[...])


def lstm_regressor_forward(x_btI, h0, c0, params):
    """x_btI: [B, T, I] batch-first (PyTorch convention). h0/c0: [L, B, H]."""
    B, T, I = x_btI.shape
    L, _, H = h0.shape

    # pad batch to a multiple of 8 sublanes so all vector work is full-width
    Bp = ((B + 7) // 8) * 8
    pad = Bp - B
    x_p = jnp.pad(x_btI, ((0, pad), (0, 0), (0, 0)))
    h0_p = jnp.pad(h0, ((0, 0), (0, pad), (0, 0)))
    c0_p = jnp.pad(c0, ((0, 0), (0, pad), (0, 0)))

    # time-major, flattened to [T*Bp, I] so the layer-0 input projection is one matmul
    x_flat = jnp.transpose(x_p, (1, 0, 2)).reshape(T * Bp, I)

    # stack layer-1 input+recurrent weights into one [2H, 4H] matrix
    w1 = jnp.concatenate([params["wih1"], params["whh1"]], axis=0)

    vmem = pl.BlockSpec(memory_space=pltpu.MemorySpace.VMEM)
    out_p = pl.pallas_call(
        lstm_regressor_kernel,
        out_shape=jax.ShapeDtypeStruct((Bp, 1), jnp.float32),
        in_specs=[vmem] * 10,
        out_specs=vmem,
        # TODO(synk): at larger batch, add a batch grid axis with
        # dimension_semantics=("parallel",) to use both v7x TensorCores.
    )(x_flat, h0_p, c0_p,
      params["wih0"], params["whh0"], params["b0"],
      w1, params["b1"],
      params["wlin"], params["blin"])
    return out_p[:B]


def make_params(key, input_size, hidden_dim):
    """Deterministic synthetic params, PyTorch-style uniform(-1/sqrt(H), 1/sqrt(H))."""
    H = hidden_dim
    bound = 1.0 / jnp.sqrt(jnp.float32(H))
    ks = jax.random.split(key, 12)
    u = lambda k, shape: jax.random.uniform(k, shape, jnp.float32, -bound, bound)
    # layer 0: W_ih [4H, I], W_hh [4H, H]; layer 1: W_ih [4H, H], W_hh [4H, H]
    wih0 = u(ks[0], (4 * H, input_size)).T          # [I, 4H]
    whh0 = u(ks[1], (4 * H, H)).T                   # [H, 4H]
    b0 = (u(ks[2], (4 * H,)) + u(ks[3], (4 * H,))).reshape(1, 4 * H)
    wih1 = u(ks[4], (4 * H, H)).T                   # [H, 4H]
    whh1 = u(ks[5], (4 * H, H)).T                   # [H, 4H]
    b1 = (u(ks[6], (4 * H,)) + u(ks[7], (4 * H,))).reshape(1, 4 * H)
    wlin = u(ks[8], (1, H)).T                       # [H, 1]
    blin = u(ks[9], (1,)).reshape(1, 1)             # [1, 1]
    return dict(wih0=wih0, whh0=whh0, b0=b0,
                wih1=wih1, whh1=whh1, b1=b1,
                wlin=wlin, blin=blin)


def reference_forward(x, h0, c0, p):
    """Pure-JAX reference of the same math for a sanity check."""
    B, T, I = x.shape
    H = h0.shape[-1]

    def run_layer(seq, h, c, wih, whh, b):
        outs = []
        for t in range(T):
            g = seq[:, t, :] @ wih + h @ whh + b
            i = jax.nn.sigmoid(g[:, :H])
            f = jax.nn.sigmoid(g[:, H:2 * H])
            gg = jnp.tanh(g[:, 2 * H:3 * H])
            o = jax.nn.sigmoid(g[:, 3 * H:])
            c = f * c + i * gg
            h = o * jnp.tanh(c)
            outs.append(h)
        return jnp.stack(outs, axis=1), h, c

    y0, _, _ = run_layer(x, h0[0], c0[0], p["wih0"], p["whh0"], p["b0"])
    y1, h_last, _ = run_layer(y0, h0[1], c0[1], p["wih1"], p["whh1"], p["b1"])
    return h_last @ p["wlin"] + p["blin"]


if __name__ == "__main__":
    B, T, I, H, L = 2, 8, 2, 32, 2
    key = jax.random.PRNGKey(0)
    kx, kh, kc, kp = jax.random.split(key, 4)

    x = jax.random.normal(kx, (B, T, I), jnp.float32)       # batch-first like PyTorch
    # torch.randn initial states in forward() -> deterministic normals here
    h0 = jax.random.normal(kh, (L, B, H), jnp.float32)
    c0 = jax.random.normal(kc, (L, B, H), jnp.float32)
    params = make_params(kp, I, H)

    out = lstm_regressor_forward(x, h0, c0, params)
    out = jax.block_until_ready(out)

    ref = reference_forward(x, h0, c0, params)
    assert out.shape == (B, 1)
    assert jnp.allclose(out, ref, atol=1e-4, rtol=1e-4), (out, ref)
    print("KERNEL_OK")
</pallas_src>

<mosaic_0001>
module attributes {stable_mosaic.version = 11 : i64} {
  func.func @lstm_regressor_kernel(%arg0: memref<64x2xf32, #tpu.memory_space<vmem>>, %arg1: memref<2x8x32xf32, #tpu.memory_space<vmem>>, %arg2: memref<2x8x32xf32, #tpu.memory_space<vmem>>, %arg3: memref<2x128xf32, #tpu.memory_space<vmem>>, %arg4: memref<32x128xf32, #tpu.memory_space<vmem>>, %arg5: memref<1x128xf32, #tpu.memory_space<vmem>>, %arg6: memref<64x128xf32, #tpu.memory_space<vmem>>, %arg7: memref<1x128xf32, #tpu.memory_space<vmem>>, %arg8: memref<32x1xf32, #tpu.memory_space<vmem>>, %arg9: memref<1x1xf32, #tpu.memory_space<vmem>>, %arg10: memref<8x1xf32, #tpu.memory_space<vmem>>) attributes {dimension_semantics = [], scalar_prefetch = 0 : i64, scratch_operands = 0 : i64, tpu.core_type = #tpu.core_type<tc>} {
    %c0 = arith.constant 0 : index
    %c0_0 = arith.constant 0 : index
    %0 = vector.load %arg3[%c0, %c0_0] : memref<2x128xf32, #tpu.memory_space<vmem>>, vector<2x128xf32>
    %c0_1 = arith.constant 0 : index
    %c0_2 = arith.constant 0 : index
    %1 = vector.load %arg4[%c0_1, %c0_2] : memref<32x128xf32, #tpu.memory_space<vmem>>, vector<32x128xf32>
    %c0_3 = arith.constant 0 : index
    %c0_4 = arith.constant 0 : index
    %2 = vector.load %arg6[%c0_3, %c0_4] : memref<64x128xf32, #tpu.memory_space<vmem>>, vector<64x128xf32>
    %c0_5 = arith.constant 0 : index
    %c0_6 = arith.constant 0 : index
    %3 = vector.load %arg8[%c0_5, %c0_6] : memref<32x1xf32, #tpu.memory_space<vmem>>, vector<32x1xf32>
    %c0_7 = arith.constant 0 : index
    %c0_8 = arith.constant 0 : index
    %4 = vector.load %arg7[%c0_7, %c0_8] : memref<1x128xf32, #tpu.memory_space<vmem>>, vector<1x128xf32>
    %5 = vector.shape_cast %4 : vector<1x128xf32> to vector<1x128xf32>
    %6 = vector.broadcast %5 : vector<1x128xf32> to vector<8x128xf32>
    %c0_9 = arith.constant 0 : index
    %c0_10 = arith.constant 0 : index
    %7 = vector.load %arg0[%c0_9, %c0_10] : memref<64x2xf32, #tpu.memory_space<vmem>>, vector<64x2xf32>
    %cst = arith.constant dense<0.000000e+00> : vector<64x128xf32>
    %8 = tpu.matmul %7, %0, %cst {dimension_numbers = #tpu.dot_dimension_numbers<[1], [0], [0], [1], [0, 0, 1, 1], [], []>} : vector<64x2xf32>, vector<2x128xf32>, vector<64x128xf32> -> vector<64x128xf32>
    %c0_11 = arith.constant 0 : index
    %c0_12 = arith.constant 0 : index
    %9 = vector.load %arg5[%c0_11, %c0_12] : memref<1x128xf32, #tpu.memory_space<vmem>>, vector<1x128xf32>
    %10 = vector.broadcast %9 : vector<1x128xf32> to vector<64x128xf32>
    %11 = arith.addf %8, %10 : vector<64x128xf32>
    %c0_13 = arith.constant 0 : index
    %c0_14 = arith.constant 0 : index
    %c0_15 = arith.constant 0 : index
    %12 = vector.load %arg1[%c0_13, %c0_14, %c0_15] : memref<2x8x32xf32, #tpu.memory_space<vmem>>, vector<1x8x32xf32>
    %13 = vector.shape_cast %12 : vector<1x8x32xf32> to vector<8x32xf32>
    %c0_16 = arith.constant 0 : index
    %c0_17 = arith.constant 0 : index
    %c0_18 = arith.constant 0 : index
    %14 = vector.load %arg2[%c0_16, %c0_17, %c0_18] : memref<2x8x32xf32, #tpu.memory_space<vmem>>, vector<1x8x32xf32>
    %15 = vector.shape_cast %14 : vector<1x8x32xf32> to vector<8x32xf32>
    %c1 = arith.constant 1 : index
    %c0_19 = arith.constant 0 : index
    %c0_20 = arith.constant 0 : index
    %16 = vector.load %arg1[%c1, %c0_19, %c0_20] : memref<2x8x32xf32, #tpu.memory_space<vmem>>, vector<1x8x32xf32>
    %17 = vector.shape_cast %16 : vector<1x8x32xf32> to vector<8x32xf32>
    %c1_21 = arith.constant 1 : index
    %c0_22 = arith.constant 0 : index
    %c0_23 = arith.constant 0 : index
    %18 = vector.load %arg2[%c1_21, %c0_22, %c0_23] : memref<2x8x32xf32, #tpu.memory_space<vmem>>, vector<1x8x32xf32>
    %19 = vector.shape_cast %18 : vector<1x8x32xf32> to vector<8x32xf32>
    %20 = vector.extract_strided_slice %11 {offsets = [0, 0], sizes = [8, 128], strides = [1, 1]} : vector<64x128xf32> to vector<8x128xf32>
    %cst_24 = arith.constant dense<0.000000e+00> : vector<8x128xf32>
    %21 = tpu.matmul %13, %1, %cst_24 {dimension_numbers = #tpu.dot_dimension_numbers<[1], [0], [0], [1], [0, 0, 1, 1], [], []>} : vector<8x32xf32>, vector<32x128xf32>, vector<8x128xf32> -> vector<8x128xf32>
    %22 = arith.addf %20, %21 : vector<8x128xf32>
    %23 = arith.negf %22 : vector<8x128xf32>
    %24 = math.exp %23 : vector<8x128xf32>
    %cst_25 = arith.constant 1.000000e+00 : f32
    %25 = vector.broadcast %cst_25 : f32 to vector<8x128xf32>
    %26 = arith.addf %25, %24 : vector<8x128xf32>
    %27 = arith.divf %25, %26 : vector<8x128xf32>
    %28 = math.tanh %22 : vector<8x128xf32>
    %29 = vector.extract_strided_slice %27 {offsets = [0, 0], sizes = [8, 32], strides = [1, 1]} : vector<8x128xf32> to vector<8x32xf32>
    %30 = vector.extract_strided_slice %27 {offsets = [0, 32], sizes = [8, 32], strides = [1, 1]} : vector<8x128xf32> to vector<8x32xf32>
    %31 = vector.extract_strided_slice %28 {offsets = [0, 64], sizes = [8, 32], strides = [1, 1]} : vector<8x128xf32> to vector<8x32xf32>
    %32 = vector.extract_strided_slice %27 {offsets = [0, 96], sizes = [8, 32], strides = [1, 1]} : vector<8x128xf32> to vector<8x32xf32>
    %33 = arith.mulf %30, %15 : vector<8x32xf32>
    %34 = arith.mulf %29, %31 : vector<8x32xf32>
    %35 = arith.addf %33, %34 : vector<8x32xf32>
    %36 = math.tanh %35 : vector<8x32xf32>
    %37 = arith.mulf %32, %36 : vector<8x32xf32>
    %38 = tpu.concatenate %37, %17 in 1 : vector<8x32xf32>, vector<8x32xf32> -> vector<8x64xf32>
    %cst_26 = arith.constant dense<0.000000e+00> : vector<8x128xf32>
    %39 = tpu.matmul %38, %2, %cst_26 {dimension_numbers = #tpu.dot_dimension_numbers<[1], [0], [0], [1], [0, 0, 1, 1], [], []>} : vector<8x64xf32>, vector<64x128xf32>, vector<8x128xf32> -> vector<8x128xf32>
    %40 = arith.addf %39, %6 : vector<8x128xf32>
    %41 = arith.negf %40 : vector<8x128xf32>
    %42 = math.exp %41 : vector<8x128xf32>
    %cst_27 = arith.constant 1.000000e+00 : f32
    %43 = vector.broadcast %cst_27 : f32 to vector<8x128xf32>
    %44 = arith.addf %43, %42 : vector<8x128xf32>
    %45 = arith.divf %43, %44 : vector<8x128xf32>
    %46 = math.tanh %40 : vector<8x128xf32>
    %47 = vector.extract_strided_slice %45 {offsets = [0, 0], sizes = [8, 32], strides = [1, 1]} : vector<8x128xf32> to vector<8x32xf32>
    %48 = vector.extract_strided_slice %45 {offsets = [0, 32], sizes = [8, 32], strides = [1, 1]} : vector<8x128xf32> to vector<8x32xf32>
    %49 = vector.extract_strided_slice %46 {offsets = [0, 64], sizes = [8, 32], strides = [1, 1]} : vector<8x128xf32> to vector<8x32xf32>
    %50 = vector.extract_strided_slice %45 {offsets = [0, 96], sizes = [8, 32], strides = [1, 1]} : vector<8x128xf32> to vector<8x32xf32>
    %51 = arith.mulf %48, %19 : vector<8x32xf32>
    %52 = arith.mulf %47, %49 : vector<8x32xf32>
    %53 = arith.addf %51, %52 : vector<8x32xf32>
    %54 = math.tanh %53 : vector<8x32xf32>
    %55 = arith.mulf %50, %54 : vector<8x32xf32>
    %56 = vector.extract_strided_slice %11 {offsets = [8, 0], sizes = [8, 128], strides = [1, 1]} : vector<64x128xf32> to vector<8x128xf32>
    %cst_28 = arith.constant dense<0.000000e+00> : vector<8x128xf32>
    %57 = tpu.matmul %37, %1, %cst_28 {dimension_numbers = #tpu.dot_dimension_numbers<[1], [0], [0], [1], [0, 0, 1, 1], [], []>} : vector<8x32xf32>, vector<32x128xf32>, vector<8x128xf32> -> vector<8x128xf32>
    %58 = arith.addf %56, %57 : vector<8x128xf32>
    %59 = arith.negf %58 : vector<8x128xf32>
    %60 = math.exp %59 : vector<8x128xf32>
    %cst_29 = arith.constant 1.000000e+00 : f32
    %61 = vector.broadcast %cst_29 : f32 to vector<8x128xf32>
    %62 = arith.addf %61, %60 : vector<8x128xf32>
    %63 = arith.divf %61, %62 : vector<8x128xf32>
    %64 = math.tanh %58 : vector<8x128xf32>
    %65 = vector.extract_strided_slice %63 {offsets = [0, 0], sizes = [8, 32], strides = [1, 1]} : vector<8x128xf32> to vector<8x32xf32>
    %66 = vector.extract_strided_slice %63 {offsets = [0, 32], sizes = [8, 32], strides = [1, 1]} : vector<8x128xf32> to vector<8x32xf32>
    %67 = vector.extract_strided_slice %64 {offsets = [0, 64], sizes = [8, 32], strides = [1, 1]} : vector<8x128xf32> to vector<8x32xf32>
    %68 = vector.extract_strided_slice %63 {offsets = [0, 96], sizes = [8, 32], strides = [1, 1]} : vector<8x128xf32> to vector<8x32xf32>
    %69 = arith.mulf %66, %35 : vector<8x32xf32>
    %70 = arith.mulf %65, %67 : vector<8x32xf32>
    %71 = arith.addf %69, %70 : vector<8x32xf32>
    %72 = math.tanh %71 : vector<8x32xf32>
    %73 = arith.mulf %68, %72 : vector<8x32xf32>
    %74 = tpu.concatenate %73, %55 in 1 : vector<8x32xf32>, vector<8x32xf32> -> vector<8x64xf32>
    %cst_30 = arith.constant dense<0.000000e+00> : vector<8x128xf32>
    %75 = tpu.matmul %74, %2, %cst_30 {dimension_numbers = #tpu.dot_dimension_numbers<[1], [0], [0], [1], [0, 0, 1, 1], [], []>} : vector<8x64xf32>, vector<64x128xf32>, vector<8x128xf32> -> vector<8x128xf32>
    %76 = arith.addf %75, %6 : vector<8x128xf32>
    %77 = arith.negf %76 : vector<8x128xf32>
    %78 = math.exp %77 : vector<8x128xf32>
    %cst_31 = arith.constant 1.000000e+00 : f32
    %79 = vector.broadcast %cst_31 : f32 to vector<8x128xf32>
    %80 = arith.addf %79, %78 : vector<8x128xf32>
    %81 = arith.divf %79, %80 : vector<8x128xf32>
    %82 = math.tanh %76 : vector<8x128xf32>
    %83 = vector.extract_strided_slice %81 {offsets = [0, 0], sizes = [8, 32], strides = [1, 1]} : vector<8x128xf32> to vector<8x32xf32>
    %84 = vector.extract_strided_slice %81 {offsets = [0, 32], sizes = [8, 32], strides = [1, 1]} : vector<8x128xf32> to vector<8x32xf32>
    %85 = vector.extract_strided_slice %82 {offsets = [0, 64], sizes = [8, 32], strides = [1, 1]} : vector<8x128xf32> to vector<8x32xf32>
    %86 = vector.extract_strided_slice %81 {offsets = [0, 96], sizes = [8, 32], strides = [1, 1]} : vector<8x128xf32> to vector<8x32xf32>
    %87 = arith.mulf %84, %53 : vector<8x32xf32>
    %88 = arith.mulf %83, %85 : vector<8x32xf32>
    %89 = arith.addf %87, %88 : vector<8x32xf32>
    %90 = math.tanh %89 : vector<8x32xf32>
    %91 = arith.mulf %86, %90 : vector<8x32xf32>
    %92 = vector.extract_strided_slice %11 {offsets = [16, 0], sizes = [8, 128], strides = [1, 1]} : vector<64x128xf32> to vector<8x128xf32>
    %cst_32 = arith.constant dense<0.000000e+00> : vector<8x128xf32>
    %93 = tpu.matmul %73, %1, %cst_32 {dimension_numbers = #tpu.dot_dimension_numbers<[1], [0], [0], [1], [0, 0, 1, 1], [], []>} : vector<8x32xf32>, vector<32x128xf32>, vector<8x128xf32> -> vector<8x128xf32>
    %94 = arith.addf %92, %93 : vector<8x128xf32>
    %95 = arith.negf %94 : vector<8x128xf32>
    %96 = math.exp %95 : vector<8x128xf32>
    %cst_33 = arith.constant 1.000000e+00 : f32
    %97 = vector.broadcast %cst_33 : f32 to vector<8x128xf32>
    %98 = arith.addf %97, %96 : vector<8x128xf32>
    %99 = arith.divf %97, %98 : vector<8x128xf32>
    %100 = math.tanh %94 : vector<8x128xf32>
    %101 = vector.extract_strided_slice %99 {offsets = [0, 0], sizes = [8, 32], strides = [1, 1]} : vector<8x128xf32> to vector<8x32xf32>
    %102 = vector.extract_strided_slice %99 {offsets = [0, 32], sizes = [8, 32], strides = [1, 1]} : vector<8x128xf32> to vector<8x32xf32>
    %103 = vector.extract_strided_slice %100 {offsets = [0, 64], sizes = [8, 32], strides = [1, 1]} : vector<8x128xf32> to vector<8x32xf32>
    %104 = vector.extract_strided_slice %99 {offsets = [0, 96], sizes = [8, 32], strides = [1, 1]} : vector<8x128xf32> to vector<8x32xf32>
    %105 = arith.mulf %102, %71 : vector<8x32xf32>
    %106 = arith.mulf %101, %103 : vector<8x32xf32>
    %107 = arith.addf %105, %106 : vector<8x32xf32>
    %108 = math.tanh %107 : vector<8x32xf32>
    %109 = arith.mulf %104, %108 : vector<8x32xf32>
    %110 = tpu.concatenate %109, %91 in 1 : vector<8x32xf32>, vector<8x32xf32> -> vector<8x64xf32>
    %cst_34 = arith.constant dense<0.000000e+00> : vector<8x128xf32>
    %111 = tpu.matmul %110, %2, %cst_34 {dimension_numbers = #tpu.dot_dimension_numbers<[1], [0], [0], [1], [0, 0, 1, 1], [], []>} : vector<8x64xf32>, vector<64x128xf32>, vector<8x128xf32> -> vector<8x128xf32>
    %112 = arith.addf %111, %6 : vector<8x128xf32>
    %113 = arith.negf %112 : vector<8x128xf32>
    %114 = math.exp %113 : vector<8x128xf32>
    %cst_35 = arith.constant 1.000000e+00 : f32
    %115 = vector.broadcast %cst_35 : f32 to vector<8x128xf32>
    %116 = arith.addf %115, %114 : vector<8x128xf32>
    %117 = arith.divf %115, %116 : vector<8x128xf32>
    %118 = math.tanh %112 : vector<8x128xf32>
    %119 = vector.extract_strided_slice %117 {offsets = [0, 0], sizes = [8, 32], strides = [1, 1]} : vector<8x128xf32> to vector<8x32xf32>
    %120 = vector.extract_strided_slice %117 {offsets = [0, 32], sizes = [8, 32], strides = [1, 1]} : vector<8x128xf32> to vector<8x32xf32>
    %121 = vector.extract_strided_slice %118 {offsets = [0, 64], sizes = [8, 32], strides = [1, 1]} : vector<8x128xf32> to vector<8x32xf32>
    %122 = vector.extract_strided_slice %117 {offsets = [0, 96], sizes = [8, 32], strides = [1, 1]} : vector<8x128xf32> to vector<8x32xf32>
    %123 = arith.mulf %120, %89 : vector<8x32xf32>
    %124 = arith.mulf %119, %121 : vector<8x32xf32>
    %125 = arith.addf %123, %124 : vector<8x32xf32>
    %126 = math.tanh %125 : vector<8x32xf32>
    %127 = arith.mulf %122, %126 : vector<8x32xf32>
    %128 = vector.extract_strided_slice %11 {offsets = [24, 0], sizes = [8, 128], strides = [1, 1]} : vector<64x128xf32> to vector<8x128xf32>
    %cst_36 = arith.constant dense<0.000000e+00> : vector<8x128xf32>
    %129 = tpu.matmul %109, %1, %cst_36 {dimension_numbers = #tpu.dot_dimension_numbers<[1], [0], [0], [1], [0, 0, 1, 1], [], []>} : vector<8x32xf32>, vector<32x128xf32>, vector<8x128xf32> -> vector<8x128xf32>
    %130 = arith.addf %128, %129 : vector<8x128xf32>
    %131 = arith.negf %130 : vector<8x128xf32>
    %132 = math.exp %131 : vector<8x128xf32>
    %cst_37 = arith.constant 1.000000e+00 : f32
    %133 = vector.broadcast %cst_37 : f32 to vector<8x128xf32>
    %134 = arith.addf %133, %132 : vector<8x128xf32>
    %135 = arith.divf %133, %134 : vector<8x128xf32>
    %136 = math.tanh %130 : vector<8x128xf32>
    %137 = vector.extract_strided_slice %135 {offsets = [0, 0], sizes = [8, 32], strides = [1, 1]} : vector<8x128xf32> to vector<8x32xf32>
    %138 = vector.extract_strided_slice %135 {offsets = [0, 32], sizes = [8, 32], strides = [1, 1]} : vector<8x128xf32> to vector<8x32xf32>
    %139 = vector.extract_strided_slice %136 {offsets = [0, 64], sizes = [8, 32], strides = [1, 1]} : vector<8x128xf32> to vector<8x32xf32>
    %140 = vector.extract_strided_slice %135 {offsets = [0, 96], sizes = [8, 32], strides = [1, 1]} : vector<8x128xf32> to vector<8x32xf32>
    %141 = arith.mulf %138, %107 : vector<8x32xf32>
    %142 = arith.mulf %137, %139 : vector<8x32xf32>
    %143 = arith.addf %141, %142 : vector<8x32xf32>
    %144 = math.tanh %143 : vector<8x32xf32>
    %145 = arith.mulf %140, %144 : vector<8x32xf32>
    %146 = tpu.concatenate %145, %127 in 1 : vector<8x32xf32>, vector<8x32xf32> -> vector<8x64xf32>
    %cst_38 = arith.constant dense<0.000000e+00> : vector<8x128xf32>
    %147 = tpu.matmul %146, %2, %cst_38 {dimension_numbers = #tpu.dot_dimension_numbers<[1], [0], [0], [1], [0, 0, 1, 1], [], []>} : vector<8x64xf32>, vector<64x128xf32>, vector<8x128xf32> -> vector<8x128xf32>
    %148 = arith.addf %147, %6 : vector<8x128xf32>
    %149 = arith.negf %148 : vector<8x128xf32>
    %150 = math.exp %149 : vector<8x128xf32>
    %cst_39 = arith.constant 1.000000e+00 : f32
    %151 = vector.broadcast %cst_39 : f32 to vector<8x128xf32>
    %152 = arith.addf %151, %150 : vector<8x128xf32>
    %153 = arith.divf %151, %152 : vector<8x128xf32>
    %154 = math.tanh %148 : vector<8x128xf32>
    %155 = vector.extract_strided_slice %153 {offsets = [0, 0], sizes = [8, 32], strides = [1, 1]} : vector<8x128xf32> to vector<8x32xf32>
    %156 = vector.extract_strided_slice %153 {offsets = [0, 32], sizes = [8, 32], strides = [1, 1]} : vector<8x128xf32> to vector<8x32xf32>
    %157 = vector.extract_strided_slice %154 {offsets = [0, 64], sizes = [8, 32], strides = [1, 1]} : vector<8x128xf32> to vector<8x32xf32>
    %158 = vector.extract_strided_slice %153 {offsets = [0, 96], sizes = [8, 32], strides = [1, 1]} : vector<8x128xf32> to vector<8x32xf32>
    %159 = arith.mulf %156, %125 : vector<8x32xf32>
    %160 = arith.mulf %155, %157 : vector<8x32xf32>
    %161 = arith.addf %159, %160 : vector<8x32xf32>
    %162 = math.tanh %161 : vector<8x32xf32>
    %163 = arith.mulf %158, %162 : vector<8x32xf32>
    %164 = vector.extract_strided_slice %11 {offsets = [32, 0], sizes = [8, 128], strides = [1, 1]} : vector<64x128xf32> to vector<8x128xf32>
    %cst_40 = arith.constant dense<0.000000e+00> : vector<8x128xf32>
    %165 = tpu.matmul %145, %1, %cst_40 {dimension_numbers = #tpu.dot_dimension_numbers<[1], [0], [0], [1], [0, 0, 1, 1], [], []>} : vector<8x32xf32>, vector<32x128xf32>, vector<8x128xf32> -> vector<8x128xf32>
    %166 = arith.addf %164, %165 : vector<8x128xf32>
    %167 = arith.negf %166 : vector<8x128xf32>
    %168 = math.exp %167 : vector<8x128xf32>
    %cst_41 = arith.constant 1.000000e+00 : f32
    %169 = vector.broadcast %cst_41 : f32 to vector<8x128xf32>
    %170 = arith.addf %169, %168 : vector<8x128xf32>
    %171 = arith.divf %169, %170 : vector<8x128xf32>
    %172 = math.tanh %166 : vector<8x128xf32>
    %173 = vector.extract_strided_slice %171 {offsets = [0, 0], sizes = [8, 32], strides = [1, 1]} : vector<8x128xf32> to vector<8x32xf32>
    %174 = vector.extract_strided_slice %171 {offsets = [0, 32], sizes = [8, 32], strides = [1, 1]} : vector<8x128xf32> to vector<8x32xf32>
    %175 = vector.extract_strided_slice %172 {offsets = [0, 64], sizes = [8, 32], strides = [1, 1]} : vector<8x128xf32> to vector<8x32xf32>
    %176 = vector.extract_strided_slice %171 {offsets = [0, 96], sizes = [8, 32], strides = [1, 1]} : vector<8x128xf32> to vector<8x32xf32>
    %177 = arith.mulf %174, %143 : vector<8x32xf32>
    %178 = arith.mulf %173, %175 : vector<8x32xf32>
    %179 = arith.addf %177, %178 : vector<8x32xf32>
    %180 = math.tanh %179 : vector<8x32xf32>
    %181 = arith.mulf %176, %180 : vector<8x32xf32>
    %182 = tpu.concatenate %181, %163 in 1 : vector<8x32xf32>, vector<8x32xf32> -> vector<8x64xf32>
    %cst_42 = arith.constant dense<0.000000e+00> : vector<8x128xf32>
    %183 = tpu.matmul %182, %2, %cst_42 {dimension_numbers = #tpu.dot_dimension_numbers<[1], [0], [0], [1], [0, 0, 1, 1], [], []>} : vector<8x64xf32>, vector<64x128xf32>, vector<8x128xf32> -> vector<8x128xf32>
    %184 = arith.addf %183, %6 : vector<8x128xf32>
    %185 = arith.negf %184 : vector<8x128xf32>
    %186 = math.exp %185 : vector<8x128xf32>
    %cst_43 = arith.constant 1.000000e+00 : f32
    %187 = vector.broadcast %cst_43 : f32 to vector<8x128xf32>
    %188 = arith.addf %187, %186 : vector<8x128xf32>
    %189 = arith.divf %187, %188 : vector<8x128xf32>
    %190 = math.tanh %184 : vector<8x128xf32>
    %191 = vector.extract_strided_slice %189 {offsets = [0, 0], sizes = [8, 32], strides = [1, 1]} : vector<8x128xf32> to vector<8x32xf32>
    %192 = vector.extract_strided_slice %189 {offsets = [0, 32], sizes = [8, 32], strides = [1, 1]} : vector<8x128xf32> to vector<8x32xf32>
    %193 = vector.extract_strided_slice %190 {offsets = [0, 64], sizes = [8, 32], strides = [1, 1]} : vector<8x128xf32> to vector<8x32xf32>
    %194 = vector.extract_strided_slice %189 {offsets = [0, 96], sizes = [8, 32], strides = [1, 1]} : vector<8x128xf32> to vector<8x32xf32>
    %195 = arith.mulf %192, %161 : vector<8x32xf32>
    %196 = arith.mulf %191, %193 : vector<8x32xf32>
    %197 = arith.addf %195, %196 : vector<8x32xf32>
    %198 = math.tanh %197 : vector<8x32xf32>
    %199 = arith.mulf %194, %198 : vector<8x32xf32>
    %200 = vector.extract_strided_slice %11 {offsets = [40, 0], sizes = [8, 128], strides = [1, 1]} : vector<64x128xf32> to vector<8x128xf32>
    %cst_44 = arith.constant dense<0.000000e+00> : vector<8x128xf32>
    %201 = tpu.matmul %181, %1, %cst_44 {dimension_numbers = #tpu.dot_dimension_numbers<[1], [0], [0], [1], [0, 0, 1, 1], [], []>} : vector<8x32xf32>, vector<32x128xf32>, vector<8x128xf32> -> vector<8x128xf32>
    %202 = arith.addf %200, %201 : vector<8x128xf32>
    %203 = arith.negf %202 : vector<8x128xf32>
    %204 = math.exp %203 : vector<8x128xf32>
    %cst_45 = arith.constant 1.000000e+00 : f32
    %205 = vector.broadcast %cst_45 : f32 to vector<8x128xf32>
    %206 = arith.addf %205, %204 : vector<8x128xf32>
    %207 = arith.divf %205, %206 : vector<8x128xf32>
    %208 = math.tanh %202 : vector<8x128xf32>
    %209 = vector.extract_strided_slice %207 {offsets = [0, 0], sizes = [8, 32], strides = [1, 1]} : vector<8x128xf32> to vector<8x32xf32>
    %210 = vector.extract_strided_slice %207 {offsets = [0, 32], sizes = [8, 32], strides = [1, 1]} : vector<8x128xf32> to vector<8x32xf32>
    %211 = vector.extract_strided_slice %208 {offsets = [0, 64], sizes = [8, 32], strides = [1, 1]} : vector<8x128xf32> to vector<8x32xf32>
    %212 = vector.extract_strided_slice %207 {offsets = [0, 96], sizes = [8, 32], strides = [1, 1]} : vector<8x128xf32> to vector<8x32xf32>
    %213 = arith.mulf %210, %179 : vector<8x32xf32>
    %214 = arith.mulf %209, %211 : vector<8x32xf32>
    %215 = arith.addf %213, %214 : vector<8x32xf32>
    %216 = math.tanh %215 : vector<8x32xf32>
    %217 = arith.mulf %212, %216 : vector<8x32xf32>
    %218 = tpu.concatenate %217, %199 in 1 : vector<8x32xf32>, vector<8x32xf32> -> vector<8x64xf32>
    %cst_46 = arith.constant dense<0.000000e+00> : vector<8x128xf32>
    %219 = tpu.matmul %218, %2, %cst_46 {dimension_numbers = #tpu.dot_dimension_numbers<[1], [0], [0], [1], [0, 0, 1, 1], [], []>} : vector<8x64xf32>, vector<64x128xf32>, vector<8x128xf32> -> vector<8x128xf32>
    %220 = arith.addf %219, %6 : vector<8x128xf32>
    %221 = arith.negf %220 : vector<8x128xf32>
    %222 = math.exp %221 : vector<8x128xf32>
    %cst_47 = arith.constant 1.000000e+00 : f32
    %223 = vector.broadcast %cst_47 : f32 to vector<8x128xf32>
    %224 = arith.addf %223, %222 : vector<8x128xf32>
    %225 = arith.divf %223, %224 : vector<8x128xf32>
    %226 = math.tanh %220 : vector<8x128xf32>
    %227 = vector.extract_strided_slice %225 {offsets = [0, 0], sizes = [8, 32], strides = [1, 1]} : vector<8x128xf32> to vector<8x32xf32>
    %228 = vector.extract_strided_slice %225 {offsets = [0, 32], sizes = [8, 32], strides = [1, 1]} : vector<8x128xf32> to vector<8x32xf32>
    %229 = vector.extract_strided_slice %226 {offsets = [0, 64], sizes = [8, 32], strides = [1, 1]} : vector<8x128xf32> to vector<8x32xf32>
    %230 = vector.extract_strided_slice %225 {offsets = [0, 96], sizes = [8, 32], strides = [1, 1]} : vector<8x128xf32> to vector<8x32xf32>
    %231 = arith.mulf %228, %197 : vector<8x32xf32>
    %232 = arith.mulf %227, %229 : vector<8x32xf32>
    %233 = arith.addf %231, %232 : vector<8x32xf32>
    %234 = math.tanh %233 : vector<8x32xf32>
    %235 = arith.mulf %230, %234 : vector<8x32xf32>
    %236 = vector.extract_strided_slice %11 {offsets = [48, 0], sizes = [8, 128], strides = [1, 1]} : vector<64x128xf32> to vector<8x128xf32>
    %cst_48 = arith.constant dense<0.000000e+00> : vector<8x128xf32>
    %237 = tpu.matmul %217, %1, %cst_48 {dimension_numbers = #tpu.dot_dimension_numbers<[1], [0], [0], [1], [0, 0, 1, 1], [], []>} : vector<8x32xf32>, vector<32x128xf32>, vector<8x128xf32> -> vector<8x128xf32>
    %238 = arith.addf %236, %237 : vector<8x128xf32>
    %239 = arith.negf %238 : vector<8x128xf32>
    %240 = math.exp %239 : vector<8x128xf32>
    %cst_49 = arith.constant 1.000000e+00 : f32
    %241 = vector.broadcast %cst_49 : f32 to vector<8x128xf32>
    %242 = arith.addf %241, %240 : vector<8x128xf32>
    %243 = arith.divf %241, %242 : vector<8x128xf32>
    %244 = math.tanh %238 : vector<8x128xf32>
    %245 = vector.extract_strided_slice %243 {offsets = [0, 0], sizes = [8, 32], strides = [1, 1]} : vector<8x128xf32> to vector<8x32xf32>
    %246 = vector.extract_strided_slice %243 {offsets = [0, 32], sizes = [8, 32], strides = [1, 1]} : vector<8x128xf32> to vector<8x32xf32>
    %247 = vector.extract_strided_slice %244 {offsets = [0, 64], sizes = [8, 32], strides = [1, 1]} : vector<8x128xf32> to vector<8x32xf32>
    %248 = vector.extract_strided_slice %243 {offsets = [0, 96], sizes = [8, 32], strides = [1, 1]} : vector<8x128xf32> to vector<8x32xf32>
    %249 = arith.mulf %246, %215 : vector<8x32xf32>
    %250 = arith.mulf %245, %247 : vector<8x32xf32>
    %251 = arith.addf %249, %250 : vector<8x32xf32>
    %252 = math.tanh %251 : vector<8x32xf32>
    %253 = arith.mulf %248, %252 : vector<8x32xf32>
    %254 = tpu.concatenate %253, %235 in 1 : vector<8x32xf32>, vector<8x32xf32> -> vector<8x64xf32>
    %cst_50 = arith.constant dense<0.000000e+00> : vector<8x128xf32>
    %255 = tpu.matmul %254, %2, %cst_50 {dimension_numbers = #tpu.dot_dimension_numbers<[1], [0], [0], [1], [0, 0, 1, 1], [], []>} : vector<8x64xf32>, vector<64x128xf32>, vector<8x128xf32> -> vector<8x128xf32>
    %256 = arith.addf %255, %6 : vector<8x128xf32>
    %257 = arith.negf %256 : vector<8x128xf32>
    %258 = math.exp %257 : vector<8x128xf32>
    %cst_51 = arith.constant 1.000000e+00 : f32
    %259 = vector.broadcast %cst_51 : f32 to vector<8x128xf32>
    %260 = arith.addf %259, %258 : vector<8x128xf32>
    %261 = arith.divf %259, %260 : vector<8x128xf32>
    %262 = math.tanh %256 : vector<8x128xf32>
    %263 = vector.extract_strided_slice %261 {offsets = [0, 0], sizes = [8, 32], strides = [1, 1]} : vector<8x128xf32> to vector<8x32xf32>
    %264 = vector.extract_strided_slice %261 {offsets = [0, 32], sizes = [8, 32], strides = [1, 1]} : vector<8x128xf32> to vector<8x32xf32>
    %265 = vector.extract_strided_slice %262 {offsets = [0, 64], sizes = [8, 32], strides = [1, 1]} : vector<8x128xf32> to vector<8x32xf32>
    %266 = vector.extract_strided_slice %261 {offsets = [0, 96], sizes = [8, 32], strides = [1, 1]} : vector<8x128xf32> to vector<8x32xf32>
    %267 = arith.mulf %264, %233 : vector<8x32xf32>
    %268 = arith.mulf %263, %265 : vector<8x32xf32>
    %269 = arith.addf %267, %268 : vector<8x32xf32>
    %270 = math.tanh %269 : vector<8x32xf32>
    %271 = arith.mulf %266, %270 : vector<8x32xf32>
    %272 = vector.extract_strided_slice %11 {offsets = [56, 0], sizes = [8, 128], strides = [1, 1]} : vector<64x128xf32> to vector<8x128xf32>
    %cst_52 = arith.constant dense<0.000000e+00> : vector<8x128xf32>
    %273 = tpu.matmul %253, %1, %cst_52 {dimension_numbers = #tpu.dot_dimension_numbers<[1], [0], [0], [1], [0, 0, 1, 1], [], []>} : vector<8x32xf32>, vector<32x128xf32>, vector<8x128xf32> -> vector<8x128xf32>
    %274 = arith.addf %272, %273 : vector<8x128xf32>
    %275 = arith.negf %274 : vector<8x128xf32>
    %276 = math.exp %275 : vector<8x128xf32>
    %cst_53 = arith.constant 1.000000e+00 : f32
    %277 = vector.broadcast %cst_53 : f32 to vector<8x128xf32>
    %278 = arith.addf %277, %276 : vector<8x128xf32>
    %279 = arith.divf %277, %278 : vector<8x128xf32>
    %280 = math.tanh %274 : vector<8x128xf32>
    %281 = vector.extract_strided_slice %279 {offsets = [0, 0], sizes = [8, 32], strides = [1, 1]} : vector<8x128xf32> to vector<8x32xf32>
    %282 = vector.extract_strided_slice %279 {offsets = [0, 32], sizes = [8, 32], strides = [1, 1]} : vector<8x128xf32> to vector<8x32xf32>
    %283 = vector.extract_strided_slice %280 {offsets = [0, 64], sizes = [8, 32], strides = [1, 1]} : vector<8x128xf32> to vector<8x32xf32>
    %284 = vector.extract_strided_slice %279 {offsets = [0, 96], sizes = [8, 32], strides = [1, 1]} : vector<8x128xf32> to vector<8x32xf32>
    %285 = arith.mulf %282, %251 : vector<8x32xf32>
    %286 = arith.mulf %281, %283 : vector<8x32xf32>
    %287 = arith.addf %285, %286 : vector<8x32xf32>
    %288 = math.tanh %287 : vector<8x32xf32>
    %289 = arith.mulf %284, %288 : vector<8x32xf32>
    %290 = tpu.concatenate %289, %271 in 1 : vector<8x32xf32>, vector<8x32xf32> -> vector<8x64xf32>
    %cst_54 = arith.constant dense<0.000000e+00> : vector<8x128xf32>
    %291 = tpu.matmul %290, %2, %cst_54 {dimension_numbers = #tpu.dot_dimension_numbers<[1], [0], [0], [1], [0, 0, 1, 1], [], []>} : vector<8x64xf32>, vector<64x128xf32>, vector<8x128xf32> -> vector<8x128xf32>
    %292 = arith.addf %291, %6 : vector<8x128xf32>
    %293 = arith.negf %292 : vector<8x128xf32>
    %294 = math.exp %293 : vector<8x128xf32>
    %cst_55 = arith.constant 1.000000e+00 : f32
    %295 = vector.broadcast %cst_55 : f32 to vector<8x128xf32>
    %296 = arith.addf %295, %294 : vector<8x128xf32>
    %297 = arith.divf %295, %296 : vector<8x128xf32>
    %298 = math.tanh %292 : vector<8x128xf32>
    %299 = vector.extract_strided_slice %297 {offsets = [0, 0], sizes = [8, 32], strides = [1, 1]} : vector<8x128xf32> to vector<8x32xf32>
    %300 = vector.extract_strided_slice %297 {offsets = [0, 32], sizes = [8, 32], strides = [1, 1]} : vector<8x128xf32> to vector<8x32xf32>
    %301 = vector.extract_strided_slice %298 {offsets = [0, 64], sizes = [8, 32], strides = [1, 1]} : vector<8x128xf32> to vector<8x32xf32>
    %302 = vector.extract_strided_slice %297 {offsets = [0, 96], sizes = [8, 32], strides = [1, 1]} : vector<8x128xf32> to vector<8x32xf32>
    %303 = arith.mulf %300, %269 : vector<8x32xf32>
    %304 = arith.mulf %299, %301 : vector<8x32xf32>
    %305 = arith.addf %303, %304 : vector<8x32xf32>
    %306 = math.tanh %305 : vector<8x32xf32>
    %307 = arith.mulf %302, %306 : vector<8x32xf32>
    %cst_56 = arith.constant dense<0.000000e+00> : vector<8x1xf32>
    %308 = tpu.matmul %307, %3, %cst_56 {dimension_numbers = #tpu.dot_dimension_numbers<[1], [0], [0], [1], [0, 0, 1, 1], [], []>} : vector<8x32xf32>, vector<32x1xf32>, vector<8x1xf32> -> vector<8x1xf32>
    %c0_57 = arith.constant 0 : index
    %c0_58 = arith.constant 0 : index
    %309 = vector.load %arg9[%c0_57, %c0_58] : memref<1x1xf32, #tpu.memory_space<vmem>>, vector<1x1xf32>
    %310 = vector.broadcast %309 : vector<1x1xf32> to vector<8x1xf32>
    %311 = arith.addf %308, %310 : vector<8x1xf32>
    %c0_59 = arith.constant 0 : index
    %c0_60 = arith.constant 0 : index
    %312 = vector.load %arg10[%c0_59, %c0_60] : memref<8x1xf32, #tpu.memory_space<vmem>>, vector<8x1xf32>
    tpu.vector_store %arg10[%c0_59, %c0_60], %311 {strides = array<i32>} : memref<8x1xf32, #tpu.memory_space<vmem>>, vector<8x1xf32>,
    return
  }
}

</mosaic_0001>

<llo_original>
// kernel: tpu_custom_call.1
$region0: #{tpu_custom_call.1}
  #allocation0 [shape = 'u32[]', space=smem, size = 0x4, offset = 0x4, fixed_abs, tag = 'smem constant byte address 0x4 - core index']
  #allocation1 [shape = 'u32[144,128]{1,0:T(1,128)}', space=vmem, size = 0x12000, scoped, tag = 'internal scratch']
  #allocation2 [shape = 'f32[1,1]{1,0:T(1,128)S(1)}', space=vmem, size = 0x200, scoped, tag = 'scoped memory for tpu_custom_call.1']
  %s0 = inlined_call_operand.vmem [shape: f32[64,2], index: 0, kind: input, shape index: {}]
  %s1 = inlined_call_operand.vmem [shape: f32[2,8,32], index: 1, kind: input, shape index: {}]
  %s2 = inlined_call_operand.hbm [shape: f32[2,8,32], index: 2, kind: input, shape index: {}]
  %s3 = inlined_call_operand.vmem [shape: f32[2,128], index: 3, kind: input, shape index: {}]
  %s4 = inlined_call_operand.vmem [shape: f32[32,128], index: 4, kind: input, shape index: {}]
  %s5 = inlined_call_operand.vmem [shape: f32[1,128], index: 5, kind: input, shape index: {}]
  %s6 = inlined_call_operand.vmem [shape: f32[64,128], index: 6, kind: input, shape index: {}]
  %s7 = inlined_call_operand.vmem [shape: f32[1,128], index: 7, kind: input, shape index: {}]
  %s8 = inlined_call_operand.vmem [shape: f32[32,1], index: 8, kind: input, shape index: {}]
  %s9 = inlined_call_operand.<no memory space> [shape: f32[1,1], index: 9, kind: input, shape index: {}]
  %s10 = inlined_call_operand.vmem [shape: f32[8,1], index: 10, kind: output, shape index: {}]
  %s11 = sld [smem:[#allocation0]]
  $region54: #{tpu_custom_call.1} parent=0
    _
  %s13 = ssub.s32 1, %s11
  %s14 = scalar_select 0, %s13, %s11
  %v15 = vstv %s9
  %16 = vst [vmem:[#allocation2] sm:$0x1] %v15
  $region1: #{tpu_custom_call.1} parent=0
    #allocation3 [shape = 'u8[8192]{0}', space=vmem, size = 0x2000, scoped, tag = 'input window, operand 2, single buffered']
    #allocation4 [shape = 's32[1]{0}', space=sflag, size = 0x4, scoped, tag = 'scoped memory for tpu_custom_call.1']
    %17 = vsyncpa [#allocation4], 0
    // Predicated region
    $region2: #{tpu_custom_call.1} parent=1 // pred_check
      _
    $region3: #{tpu_custom_call.1} parent=1 // pred_check_branch
      %19 = sbr.rel (0) target = $region5
    $region4: #{tpu_custom_call.1} parent=1 // pred_region
      _
    $region5: #{tpu_custom_call.1} parent=1 // pred_fallthru
      _
    // Predicated region
    $region6: #{tpu_custom_call.1} parent=1 // pred_check
      _
    $region7: #{tpu_custom_call.1} parent=1 // pred_check_branch
      %21 = sbr.rel (0) target = $region9
    $region8: #{tpu_custom_call.1} parent=1 // pred_region
      _
    $region9: #{tpu_custom_call.1} parent=1 // pred_fallthru
      _
    // Predicated region
    $region10: #{tpu_custom_call.1} parent=1 // pred_check
      _
    $region11: #{tpu_custom_call.1} parent=1 // pred_check_branch
      %23 = sbr.rel (0) target = $region13
    $region12: #{tpu_custom_call.1} parent=1 // pred_region
      %s25 = ssub.s32 256, 256
      %26 = vsyncadd [#allocation4], %s25
      %s27 = sshll.u32 [#allocation3], 4
      %s28 = int_to_ptr.vmem [resolvable:$true] %s27
      %33 = dma.hbm_to_vmem [thread:$0]  %s2, 256, %s28, [#allocation4], 128, 128, 8
    $region13: #{tpu_custom_call.1} parent=1 // pred_fallthru
      _
    // Predicated region
    $region14: #{tpu_custom_call.1} parent=1 // pred_check
      _
    $region15: #{tpu_custom_call.1} parent=1 // pred_check_branch
      %35 = sbr.rel (0) target = $region17
    $region16: #{tpu_custom_call.1} parent=1 // pred_region
      _
    $region17: #{tpu_custom_call.1} parent=1 // pred_fallthru
      _
    // Predicated region
    $region18: #{tpu_custom_call.1} parent=1 // pred_check
      _
    $region19: #{tpu_custom_call.1} parent=1 // pred_check_branch
      %37 = sbr.rel (0) target = $region21
    $region20: #{tpu_custom_call.1} parent=1 // pred_region
      _
    $region21: #{tpu_custom_call.1} parent=1 // pred_fallthru
      _
    // Predicated region
    $region22: #{tpu_custom_call.1} parent=1 // pred_check
      _
    $region23: #{tpu_custom_call.1} parent=1 // pred_check_branch
      %39 = sbr.rel (0) target = $region25
    $region24: #{tpu_custom_call.1} parent=1 // pred_region
      _
    $region25: #{tpu_custom_call.1} parent=1 // pred_fallthru
      _
    // Predicated region
    $region26: #{tpu_custom_call.1} parent=1 // pred_check
      _
    $region27: #{tpu_custom_call.1} parent=1 // pred_check_branch
      %41 = sbr.rel (0) target = $region29
    $region28: #{tpu_custom_call.1} parent=1 // pred_region
      _
    $region29: #{tpu_custom_call.1} parent=1 // pred_fallthru
      _
    // Predicated region
    $region30: #{tpu_custom_call.1} parent=1 // pred_check
      _
    $region31: #{tpu_custom_call.1} parent=1 // pred_check_branch
      %43 = sbr.rel (0) target = $region33
    $region32: #{tpu_custom_call.1} parent=1 // pred_region
      _
    $region33: #{tpu_custom_call.1} parent=1 // pred_fallthru
      _
    // Predicated region
    $region34: #{tpu_custom_call.1} parent=1 // pred_check
      _
    $region35: #{tpu_custom_call.1} parent=1 // pred_check_branch
      %45 = sbr.rel (0) target = $region37
    $region36: #{tpu_custom_call.1} parent=1 // pred_region
      _
    $region37: #{tpu_custom_call.1} parent=1 // pred_fallthru
      _
    // Predicated region
    $region38: #{tpu_custom_call.1} parent=1 // pred_check
      _
    $region39: #{tpu_custom_call.1} parent=1 // pred_check_branch
      %47 = sbr.rel (0) target = $region41
    $region40: #{tpu_custom_call.1} parent=1 // pred_region
      _
    $region41: #{tpu_custom_call.1} parent=1 // pred_fallthru
      _
    // Predicated region
    $region42: #{tpu_custom_call.1} parent=1 // pred_check
      _
    $region43: #{tpu_custom_call.1} parent=1 // pred_check_branch
      %49 = sbr.rel (0) target = $region45
    $region44: #{tpu_custom_call.1} parent=1 // pred_region
      %50 = dma.done [#allocation4], 256
    $region45: #{tpu_custom_call.1} parent=1 // pred_fallthru
      _
    %v51 = vld [vmem:[%s3] sm:$0x3]
    %v52 = vld [vmem:[%s4] sm:$0xff]
    %v53 = vld [vmem:[%s4 + $0x8] sm:$0xff]
    %v54 = vld [vmem:[%s4 + $0x10] sm:$0xff]
    %v55 = vld [vmem:[%s4 + $0x18] sm:$0xff]
    %v56 = vld [vmem:[%s6] sm:$0xff]
    %v57 = vld [vmem:[%s6 + $0x8] sm:$0xff]
    %v58 = vld [vmem:[%s6 + $0x10] sm:$0xff]
    %v59 = vld [vmem:[%s6 + $0x18] sm:$0xff]
    %v60 = vld [vmem:[%s6 + $0x20] sm:$0xff]
    %v61 = vld [vmem:[%s6 + $0x28] sm:$0xff]
    %v62 = vld [vmem:[%s6 + $0x30] sm:$0xff]
    %v63 = vld [vmem:[%s6 + $0x38] sm:$0xff]
    %v64 = vld [vmem:[%s8] sm:$0xff]
    %v65 = vld [vmem:[%s8 + $0x8] sm:$0xff]
    %v66 = vld [vmem:[%s8 + $0x10] sm:$0xff]
    %v67 = vld [vmem:[%s8 + $0x18] sm:$0xff]
    %v68 = vld [vmem:[%s7] sm:$0x1]
    %v70 = vlaneseq
    %v71 = vshrl.u32 %v70, 7
    %v72 = vsub.s32 0, %v71
    %v73 = vrot.slane %v68, %v72
    %v75 = vld [vmem:[%s0] sm:$0xff]
    %v76 = vld [vmem:[%s0 + $0x8] sm:$0xff]
    %v77 = vld [vmem:[%s0 + $0x10] sm:$0xff]
    %v78 = vld [vmem:[%s0 + $0x18] sm:$0xff]
    %v79 = vld [vmem:[%s0 + $0x20] sm:$0xff]
    %v80 = vld [vmem:[%s0 + $0x28] sm:$0xff]
    %v81 = vld [vmem:[%s0 + $0x30] sm:$0xff]
    %v82 = vld [vmem:[%s0 + $0x38] sm:$0xff]
    %v83 = vld [vmem:[%s5] sm:$0x1]
    %v85 = vlaneseq
    %v86 = vshrl.u32 %v85, 7
    %v87 = vsub.s32 0, %v86
    %v88 = vrot.slane %v83, %v87
    %vm90 = vcmask 15360
    %v92 = vsel %vm90, %v75, 0
    %v95 = vsel %vm90, %v76, 0
    %v98 = vsel %vm90, %v77, 0
    %v101 = vsel %vm90, %v78, 0
    %v104 = vsel %vm90, %v79, 0
    %v107 = vsel %vm90, %v80, 0
    %v110 = vsel %vm90, %v81, 0
    %v113 = vsel %vm90, %v82, 0
    %vm115 = vcmask 1041408
    %v117 = vsel %vm115, %v51, 0
    %119 = vmatprep.subr.mxu0 0.0
    %120 = vmatpush1.msra.mxu0 %v117
    %121 = vmatprep.subr.mxu0 0.0
    %122 = vmatpush1.msra.mxu0 0.0
    %123 = vmatprep.subr.mxu0 0.0
    %124 = vmatpush1.msra.mxu0 0.0
    %125 = vmatprep.subr.mxu0 0.0
    %126 = vmatpush1.msra.mxu0 0.0
    %127 = vmatprep.subr.mxu0 0.0
    %128 = vmatpush1.msra.mxu0 0.0
    %129 = vmatprep.subr.mxu0 0.0
    %130 = vmatpush1.msra.mxu0 0.0
    %131 = vmatprep.subr.mxu0 0.0
    %132 = vmatpush1.msra.mxu0 0.0
    %133 = vmatprep.subr.mxu0 0.0
    %134 = vmatpush1.msra.mxu0 0.0
    %135 = vmatprep.subr.mxu0 0.0
    %136 = vmatpush1.msra.mxu0 0.0
    %137 = vmatprep.subr.mxu0 0.0
    %138 = vmatpush1.msra.mxu0 0.0
    %139 = vmatprep.subr.mxu0 0.0
    %140 = vmatpush1.msra.mxu0 0.0
    %141 = vmatprep.subr.mxu0 0.0
    %142 = vmatpush1.msra.mxu0 0.0
    %143 = vmatprep.subr.mxu0 0.0
    %144 = vmatpush1.msra.mxu0 0.0
    %145 = vmatprep.subr.mxu0 0.0
    %146 = vmatpush1.msra.mxu0 0.0
    %147 = vmatprep.subr.mxu0 0.0
    %148 = vmatpush1.msra.mxu0 0.0
    %149 = vmatprep.subr.mxu0 0.0
    %150 = vmatpush1.msra.mxu0 0.0
    %151 = vmatprep.subr.mxu0 0.0
    %152 = vmatpush1.msra.mxu0 0.0
    %153 = vmatprep.subr.mxu0 0.0
    %154 = vmatpush1.msra.mxu0 0.0
    %155 = vmatprep.subr.mxu0 0.0
    %156 = vmatpush1.msra.mxu0 0.0
    %157 = vmatprep.subr.mxu0 0.0
    %158 = vmatpush1.msra.mxu0 0.0
    %159 = vmatprep.subr.mxu0 0.0
    %160 = vmatpush1.msra.mxu0 0.0
    %161 = vmatprep.subr.mxu0 0.0
    %162 = vmatpush1.msra.mxu0 0.0
    %163 = vmatprep.subr.mxu0 0.0
    %164 = vmatpush1.msra.mxu0 0.0
    %165 = vmatprep.subr.mxu0 0.0
    %166 = vmatpush1.msra.mxu0 0.0
    %167 = vmatprep.subr.mxu0 0.0
    %168 = vmatpush1.msra.mxu0 0.0
    %169 = vmatprep.subr.mxu0 0.0
    %170 = vmatpush1.msra.mxu0 0.0
    %171 = vmatprep.subr.mxu0 0.0
    %172 = vmatpush1.msra.mxu0 0.0
    %173 = vmatprep.subr.mxu0 0.0
    %174 = vmatpush1.msra.mxu0 0.0
    %175 = vmatprep.subr.mxu0 0.0
    %176 = vmatpush1.msra.mxu0 0.0
    %177 = vmatprep.subr.mxu0 0.0
    %178 = vmatpush1.msra.mxu0 0.0
    %179 = vmatprep.subr.mxu0 0.0
    %180 = vmatpush1.msra.mxu0 0.0
    %181 = vmatprep.subr.mxu0 0.0
    %182 = vmatpush1.msra.mxu0 0.0
    %183 = vmatprep.mubr.f32.mxu0 0.0
    %184 = vmatmul.mubr.f32.gmra.mrb[0].mxu0 %v92
    %v185 = vpop.f32.mrb[0].mxu0
    %v186 = vadd.f32 %v88, %v185
    %v187 = vpop.f32.mrb[0].mxu0
    %188 = vmatprep.mubr.f32.mxu0 0.0
    %189 = vmatmul.mubr.f32.gmra.mrb[0].mxu0 %v95
    %v190 = vpop.f32.mrb[0].mxu0
    %v191 = vadd.f32 %v88, %v190
    %v192 = vpop.f32.mrb[0].mxu0
    %193 = vmatprep.mubr.f32.mxu0 0.0
    %194 = vmatmul.mubr.f32.gmra.mrb[0].mxu0 %v98
    %v195 = vpop.f32.mrb[0].mxu0
    %v196 = vadd.f32 %v88, %v195
    %v197 = vpop.f32.mrb[0].mxu0
    %198 = vmatprep.mubr.f32.mxu0 0.0
    %199 = vmatmul.mubr.f32.gmra.mrb[0].mxu0 %v101
    %v200 = vpop.f32.mrb[0].mxu0
    %v201 = vadd.f32 %v88, %v200
    %v202 = vpop.f32.mrb[0].mxu0
    %203 = vmatprep.mubr.f32.mxu0 0.0
    %204 = vmatmul.mubr.f32.gmra.mrb[0].mxu0 %v104
    %v205 = vpop.f32.mrb[0].mxu0
    %v206 = vadd.f32 %v88, %v205
    %v207 = vpop.f32.mrb[0].mxu0
    %208 = vmatprep.mubr.f32.mxu0 0.0
    %209 = vmatmul.mubr.f32.gmra.mrb[0].mxu0 %v107
    %v210 = vpop.f32.mrb[0].mxu0
    %v211 = vadd.f32 %v88, %v210
    %v212 = vpop.f32.mrb[0].mxu0
    %213 = vmatprep.mubr.f32.mxu0 0.0
    %214 = vmatmul.mubr.f32.gmra.mrb[0].mxu0 %v110
    %v215 = vpop.f32.mrb[0].mxu0
    %v216 = vadd.f32 %v88, %v215
    %v217 = vpop.f32.mrb[0].mxu0
    %218 = vmatprep.mubr.f32.mxu0 0.0
    %219 = vmatmul.mubr.f32.gmra.mrb[0].mxu0 %v113
    %v220 = vpop.f32.mrb[0].mxu0
    %v221 = vadd.f32 %v88, %v220
    %v222 = vpop.f32.mrb[0].mxu0
    %223 = vdwg.mxu0
    %v224 = vld [vmem:[%s1] sm:$0xff]
    %v225 = vld [vmem:[#allocation3] sm:$0xff]
    %s226 = scalar_lea.vmem %s1, 8
    %v227 = vld [vmem:[%s226] sm:$0xff]
    %s228 = scalar_lea.vmem [#allocation3], 8
    %v229 = vld [vmem:[%s228] sm:$0xff]
    %vm230 = vcmask 261120
    %v232 = vsel %vm230, %v224, 0
    %234 = vmatprep.subr.mxu0 0.0
    %235 = vmatpush1.msra.mxu0 %v52
    %236 = vmatprep.subr.mxu0 0.0
    %237 = vmatpush1.msra.mxu0 %v53
    %238 = vmatprep.subr.mxu0 0.0
    %239 = vmatpush1.msra.mxu0 %v54
    %240 = vmatprep.subr.mxu0 0.0
    %241 = vmatpush1.msra.mxu0 %v55
    %242 = vmatprep.subr.mxu0 0.0
    %243 = vmatpush1.msra.mxu0 0.0
    %244 = vmatprep.subr.mxu0 0.0
    %245 = vmatpush1.msra.mxu0 0.0
    %246 = vmatprep.subr.mxu0 0.0
    %247 = vmatpush1.msra.mxu0 0.0
    %248 = vmatprep.subr.mxu0 0.0
    %249 = vmatpush1.msra.mxu0 0.0
    %250 = vmatprep.subr.mxu0 0.0
    %251 = vmatpush1.msra.mxu0 0.0
    %252 = vmatprep.subr.mxu0 0.0
    %253 = vmatpush1.msra.mxu0 0.0
    %254 = vmatprep.subr.mxu0 0.0
    %255 = vmatpush1.msra.mxu0 0.0
    %256 = vmatprep.subr.mxu0 0.0
    %257 = vmatpush1.msra.mxu0 0.0
    %258 = vmatprep.subr.mxu0 0.0
    %259 = vmatpush1.msra.mxu0 0.0
    %260 = vmatprep.subr.mxu0 0.0
    %261 = vmatpush1.msra.mxu0 0.0
    %262 = vmatprep.subr.mxu0 0.0
    %263 = vmatpush1.msra.mxu0 0.0
    %264 = vmatprep.subr.mxu0 0.0
    %265 = vmatpush1.msra.mxu0 0.0
    %266 = vmatprep.subr.mxu0 0.0
    %267 = vmatpush1.msra.mxu0 0.0
    %268 = vmatprep.subr.mxu0 0.0
    %269 = vmatpush1.msra.mxu0 0.0
    %270 = vmatprep.subr.mxu0 0.0
    %271 = vmatpush1.msra.mxu0 0.0
    %272 = vmatprep.subr.mxu0 0.0
    %273 = vmatpush1.msra.mxu0 0.0
    %274 = vmatprep.subr.mxu0 0.0
    %275 = vmatpush1.msra.mxu0 0.0
    %276 = vmatprep.subr.mxu0 0.0
    %277 = vmatpush1.msra.mxu0 0.0
    %278 = vmatprep.subr.mxu0 0.0
    %279 = vmatpush1.msra.mxu0 0.0
    %280 = vmatprep.subr.mxu0 0.0
    %281 = vmatpush1.msra.mxu0 0.0
    %282 = vmatprep.subr.mxu0 0.0
    %283 = vmatpush1.msra.mxu0 0.0
    %284 = vmatprep.subr.mxu0 0.0
    %285 = vmatpush1.msra.mxu0 0.0
    %286 = vmatprep.subr.mxu0 0.0
    %287 = vmatpush1.msra.mxu0 0.0
    %288 = vmatprep.subr.mxu0 0.0
    %289 = vmatpush1.msra.mxu0 0.0
    %290 = vmatprep.subr.mxu0 0.0
    %291 = vmatpush1.msra.mxu0 0.0
    %292 = vmatprep.subr.mxu0 0.0
    %293 = vmatpush1.msra.mxu0 0.0
    %294 = vmatprep.subr.mxu0 0.0
    %295 = vmatpush1.msra.mxu0 0.0
    %296 = vmatprep.subr.mxu0 0.0
    %297 = vmatpush1.msra.mxu0 0.0
    %298 = vmatprep.mubr.f32.mxu0 0.0
    %299 = vmatmul.mubr.f32.gmra.mrb[0].mxu0 %v232
    %v300 = vpop.f32.mrb[0].mxu0
    %v301 = vadd.f32 0.0, %v300
    %v302 = vpop.f32.mrb[0].mxu0
    %303 = vdwg.mxu0
    %v304 = vadd.f32 %v186, %v301
    %v305 = vxor.u32 %v304, 2147483648
    %v306 = vmul.f32 %v305, 1.442695
    %v307 = vpow.pop %v306
    %v308 = vadd.f32 %v307, 1.0
    %v309 = vrcp.pop %v308
    %v310 = vmul.f32 1.0, %v309
    %v311 = vtanh.pop %v304
    %313 = vrot.lane.b32.xlu0 %v225, 32
    %v314 = vpop.permute.xlu0 %313
    %v316 = vmul.f32 %v310, %v314
    %318 = vrot.lane.b32.xlu0 %v311, 64
    %v319 = vpop.permute.xlu0 %318
    %v321 = vmul.f32 %v310, %v319
    %323 = vrot.lane.b32.xlu0 %v321, 32
    %v324 = vpop.permute.xlu0 %323
    %v326 = vadd.f32 %v316, %v324
    %v327 = vtanh.pop %v326
    %329 = vrot.lane.b32.xlu0 %v327, 64
    %v330 = vpop.permute.xlu0 %329
    %v332 = vmul.f32 %v310, %v330
    %334 = vrot.lane.b32.xlu0 %v332, 32
    %v335 = vpop.permute.xlu0 %334
    %338 = vrot.lane.b32.xlu0 %v227, 32
    %v339 = vpop.permute.xlu0 %338
    %v341 = vsel %vm230, %v335, %v339
    %vm342 = vcmask 523264
    %v344 = vsel %vm342, %v341, 0
    %346 = vmatprep.subr.mxu0 0.0
    %347 = vmatpush1.msra.mxu0 %v56
    %348 = vmatprep.subr.mxu0 0.0
    %349 = vmatpush1.msra.mxu0 %v57
    %350 = vmatprep.subr.mxu0 0.0
    %351 = vmatpush1.msra.mxu0 %v58
    %352 = vmatprep.subr.mxu0 0.0
    %353 = vmatpush1.msra.mxu0 %v59
    %354 = vmatprep.subr.mxu0 0.0
    %355 = vmatpush1.msra.mxu0 %v60
    %356 = vmatprep.subr.mxu0 0.0
    %357 = vmatpush1.msra.mxu0 %v61
    %358 = vmatprep.subr.mxu0 0.0
    %359 = vmatpush1.msra.mxu0 %v62
    %360 = vmatprep.subr.mxu0 0.0
    %361 = vmatpush1.msra.mxu0 %v63
    %362 = vmatprep.subr.mxu0 0.0
    %363 = vmatpush1.msra.mxu0 0.0
    %364 = vmatprep.subr.mxu0 0.0
    %365 = vmatpush1.msra.mxu0 0.0
    %366 = vmatprep.subr.mxu0 0.0
    %367 = vmatpush1.msra.mxu0 0.0
    %368 = vmatprep.subr.mxu0 0.0
    %369 = vmatpush1.msra.mxu0 0.0
    %370 = vmatprep.subr.mxu0 0.0
    %371 = vmatpush1.msra.mxu0 0.0
    %372 = vmatprep.subr.mxu0 0.0
    %373 = vmatpush1.msra.mxu0 0.0
    %374 = vmatprep.subr.mxu0 0.0
    %375 = vmatpush1.msra.mxu0 0.0
    %376 = vmatprep.subr.mxu0 0.0
    %377 = vmatpush1.msra.mxu0 0.0
    %378 = vmatprep.subr.mxu0 0.0
    %379 = vmatpush1.msra.mxu0 0.0
    %380 = vmatprep.subr.mxu0 0.0
    %381 = vmatpush1.msra.mxu0 0.0
    %382 = vmatprep.subr.mxu0 0.0
    %383 = vmatpush1.msra.mxu0 0.0
    %384 = vmatprep.subr.mxu0 0.0
    %385 = vmatpush1.msra.mxu0 0.0
    %386 = vmatprep.subr.mxu0 0.0
    %387 = vmatpush1.msra.mxu0 0.0
    %388 = vmatprep.subr.mxu0 0.0
    %389 = vmatpush1.msra.mxu0 0.0
    %390 = vmatprep.subr.mxu0 0.0
    %391 = vmatpush1.msra.mxu0 0.0
    %392 = vmatprep.subr.mxu0 0.0
    %393 = vmatpush1.msra.mxu0 0.0
    %394 = vmatprep.subr.mxu0 0.0
    %395 = vmatpush1.msra.mxu0 0.0
    %396 = vmatprep.subr.mxu0 0.0
    %397 = vmatpush1.msra.mxu0 0.0
    %398 = vmatprep.subr.mxu0 0.0
    %399 = vmatpush1.msra.mxu0 0.0
    %400 = vmatprep.subr.mxu0 0.0
    %401 = vmatpush1.msra.mxu0 0.0
    %402 = vmatprep.subr.mxu0 0.0
    %403 = vmatpush1.msra.mxu0 0.0
    %404 = vmatprep.subr.mxu0 0.0
    %405 = vmatpush1.msra.mxu0 0.0
    %406 = vmatprep.subr.mxu0 0.0
    %407 = vmatpush1.msra.mxu0 0.0
    %408 = vmatprep.subr.mxu0 0.0
    %409 = vmatpush1.msra.mxu0 0.0
    %410 = vmatprep.mubr.f32.mxu0 0.0
    %411 = vmatmul.mubr.f32.gmra.mrb[0].mxu0 %v344
    %v412 = vpop.f32.mrb[0].mxu0
    %v413 = vadd.f32 %v73, %v412
    %v414 = vpop.f32.mrb[0].mxu0
    %415 = vdwg.mxu0
    %v416 = vxor.u32 %v413, 2147483648
    %v417 = vmul.f32 %v416, 1.442695
    %v418 = vpow.pop %v417
    %v419 = vadd.f32 %v418, 1.0
    %v420 = vrcp.pop %v419
    %v421 = vmul.f32 1.0, %v420
    %v422 = vtanh.pop %v413
    %424 = vrot.lane.b32.xlu0 %v229, 32
    %v425 = vpop.permute.xlu0 %424
    %v427 = vmul.f32 %v421, %v425
    %429 = vrot.lane.b32.xlu0 %v422, 64
    %v430 = vpop.permute.xlu0 %429
    %v432 = vmul.f32 %v421, %v430
    %434 = vrot.lane.b32.xlu0 %v432, 32
    %v435 = vpop.permute.xlu0 %434
    %v437 = vadd.f32 %v427, %v435
    %v438 = vtanh.pop %v437
    %440 = vrot.lane.b32.xlu0 %v438, 64
    %v441 = vpop.permute.xlu0 %440
    %v443 = vmul.f32 %v421, %v441
    %v444 = vsel %vm230, %v335, 0
    %446 = vmatprep.subr.mxu0 0.0
    %447 = vmatpush1.msra.mxu0 %v52
    %448 = vmatprep.subr.mxu0 0.0
    %449 = vmatpush1.msra.mxu0 %v53
    %450 = vmatprep.subr.mxu0 0.0
    %451 = vmatpush1.msra.mxu0 %v54
    %452 = vmatprep.subr.mxu0 0.0
    %453 = vmatpush1.msra.mxu0 %v55
    %454 = vmatprep.subr.mxu0 0.0
    %455 = vmatpush1.msra.mxu0 0.0
    %456 = vmatprep.subr.mxu0 0.0
    %457 = vmatpush1.msra.mxu0 0.0
    %458 = vmatprep.subr.mxu0 0.0
    %459 = vmatpush1.msra.mxu0 0.0
    %460 = vmatprep.subr.mxu0 0.0
    %461 = vmatpush1.msra.mxu0 0.0
    %462 = vmatprep.subr.mxu0 0.0
    %463 = vmatpush1.msra.mxu0 0.0
    %464 = vmatprep.subr.mxu0 0.0
    %465 = vmatpush1.msra.mxu0 0.0
    %466 = vmatprep.subr.mxu0 0.0
    %467 = vmatpush1.msra.mxu0 0.0
    %468 = vmatprep.subr.mxu0 0.0
    %469 = vmatpush1.msra.mxu0 0.0
    %470 = vmatprep.subr.mxu0 0.0
    %471 = vmatpush1.msra.mxu0 0.0
    %472 = vmatprep.subr.mxu0 0.0
    %473 = vmatpush1.msra.mxu0 0.0
    %474 = vmatprep.subr.mxu0 0.0
    %475 = vmatpush1.msra.mxu0 0.0
    %476 = vmatprep.subr.mxu0 0.0
    %477 = vmatpush1.msra.mxu0 0.0
    %478 = vmatprep.subr.mxu0 0.0
    %479 = vmatpush1.msra.mxu0 0.0
    %480 = vmatprep.subr.mxu0 0.0
    %481 = vmatpush1.msra.mxu0 0.0
    %482 = vmatprep.subr.mxu0 0.0
    %483 = vmatpush1.msra.mxu0 0.0
    %484 = vmatprep.subr.mxu0 0.0
    %485 = vmatpush1.msra.mxu0 0.0
    %486 = vmatprep.subr.mxu0 0.0
    %487 = vmatpush1.msra.mxu0 0.0
    %488 = vmatprep.subr.mxu0 0.0
    %489 = vmatpush1.msra.mxu0 0.0
    %490 = vmatprep.subr.mxu0 0.0
    %491 = vmatpush1.msra.mxu0 0.0
    %492 = vmatprep.subr.mxu0 0.0
    %493 = vmatpush1.msra.mxu0 0.0
    %494 = vmatprep.subr.mxu0 0.0
    %495 = vmatpush1.msra.mxu0 0.0
    %496 = vmatprep.subr.mxu0 0.0
    %497 = vmatpush1.msra.mxu0 0.0
    %498 = vmatprep.subr.mxu0 0.0
    %499 = vmatpush1.msra.mxu0 0.0
    %500 = vmatprep.subr.mxu0 0.0
    %501 = vmatpush1.msra.mxu0 0.0
    %502 = vmatprep.subr.mxu0 0.0
    %503 = vmatpush1.msra.mxu0 0.0
    %504 = vmatprep.subr.mxu0 0.0
    %505 = vmatpush1.msra.mxu0 0.0
    %506 = vmatprep.subr.mxu0 0.0
    %507 = vmatpush1.msra.mxu0 0.0
    %508 = vmatprep.subr.mxu0 0.0
    %509 = vmatpush1.msra.mxu0 0.0
    %510 = vmatprep.mubr.f32.mxu0 0.0
    %511 = vmatmul.mubr.f32.gmra.mrb[0].mxu0 %v444
    %v512 = vpop.f32.mrb[0].mxu0
    %v513 = vadd.f32 0.0, %v512
    %v514 = vpop.f32.mrb[0].mxu0
    %515 = vdwg.mxu0
    %v516 = vadd.f32 %v191, %v513
    %v517 = vxor.u32 %v516, 2147483648
    %v518 = vmul.f32 %v517, 1.442695
    %v519 = vpow.pop %v518
    %v520 = vadd.f32 %v519, 1.0
    %v521 = vrcp.pop %v520
    %v522 = vmul.f32 1.0, %v521
    %v523 = vtanh.pop %v516
    %v524 = vmul.f32 %v522, %v326
    %526 = vrot.lane.b32.xlu0 %v523, 64
    %v527 = vpop.permute.xlu0 %526
    %v529 = vmul.f32 %v522, %v527
    %531 = vrot.lane.b32.xlu0 %v529, 32
    %v532 = vpop.permute.xlu0 %531
    %v534 = vadd.f32 %v524, %v532
    %v535 = vtanh.pop %v534
    %537 = vrot.lane.b32.xlu0 %v535, 64
    %v538 = vpop.permute.xlu0 %537
    %v540 = vmul.f32 %v522, %v538
    %542 = vrot.lane.b32.xlu0 %v540, 32
    %v543 = vpop.permute.xlu0 %542
    %546 = vrot.lane.b32.xlu0 %v443, 64
    %v547 = vpop.permute.xlu0 %546
    %v549 = vsel %vm230, %v543, %v547
    %v551 = vsel %vm342, %v549, 0
    %553 = vmatprep.subr.mxu0 0.0
    %554 = vmatpush1.msra.mxu0 %v56
    %555 = vmatprep.subr.mxu0 0.0
    %556 = vmatpush1.msra.mxu0 %v57
    %557 = vmatprep.subr.mxu0 0.0
    %558 = vmatpush1.msra.mxu0 %v58
    %559 = vmatprep.subr.mxu0 0.0
    %560 = vmatpush1.msra.mxu0 %v59
    %561 = vmatprep.subr.mxu0 0.0
    %562 = vmatpush1.msra.mxu0 %v60
    %563 = vmatprep.subr.mxu0 0.0
    %564 = vmatpush1.msra.mxu0 %v61
    %565 = vmatprep.subr.mxu0 0.0
    %566 = vmatpush1.msra.mxu0 %v62
    %567 = vmatprep.subr.mxu0 0.0
    %568 = vmatpush1.msra.mxu0 %v63
    %569 = vmatprep.subr.mxu0 0.0
    %570 = vmatpush1.msra.mxu0 0.0
    %571 = vmatprep.subr.mxu0 0.0
    %572 = vmatpush1.msra.mxu0 0.0
    %573 = vmatprep.subr.mxu0 0.0
    %574 = vmatpush1.msra.mxu0 0.0
    %575 = vmatprep.subr.mxu0 0.0
    %576 = vmatpush1.msra.mxu0 0.0
    %577 = vmatprep.subr.mxu0 0.0
    %578 = vmatpush1.msra.mxu0 0.0
    %579 = vmatprep.subr.mxu0 0.0
    %580 = vmatpush1.msra.mxu0 0.0
    %581 = vmatprep.subr.mxu0 0.0
    %582 = vmatpush1.msra.mxu0 0.0
    %583 = vmatprep.subr.mxu0 0.0
    %584 = vmatpush1.msra.mxu0 0.0
    %585 = vmatprep.subr.mxu0 0.0
    %586 = vmatpush1.msra.mxu0 0.0
    %587 = vmatprep.subr.mxu0 0.0
    %588 = vmatpush1.msra.mxu0 0.0
    %589 = vmatprep.subr.mxu0 0.0
    %590 = vmatpush1.msra.mxu0 0.0
    %591 = vmatprep.subr.mxu0 0.0
    %592 = vmatpush1.msra.mxu0 0.0
    %593 = vmatprep.subr.mxu0 0.0
    %594 = vmatpush1.msra.mxu0 0.0
    %595 = vmatprep.subr.mxu0 0.0
    %596 = vmatpush1.msra.mxu0 0.0
    %597 = vmatprep.subr.mxu0 0.0
    %598 = vmatpush1.msra.mxu0 0.0
    %599 = vmatprep.subr.mxu0 0.0
    %600 = vmatpush1.msra.mxu0 0.0
    %601 = vmatprep.subr.mxu0 0.0
    %602 = vmatpush1.msra.mxu0 0.0
    %603 = vmatprep.subr.mxu0 0.0
    %604 = vmatpush1.msra.mxu0 0.0
    %605 = vmatprep.subr.mxu0 0.0
    %606 = vmatpush1.msra.mxu0 0.0
    %607 = vmatprep.subr.mxu0 0.0
    %608 = vmatpush1.msra.mxu0 0.0
    %609 = vmatprep.subr.mxu0 0.0
    %610 = vmatpush1.msra.mxu0 0.0
    %611 = vmatprep.subr.mxu0 0.0
    %612 = vmatpush1.msra.mxu0 0.0
    %613 = vmatprep.subr.mxu0 0.0
    %614 = vmatpush1.msra.mxu0 0.0
    %615 = vmatprep.subr.mxu0 0.0
    %616 = vmatpush1.msra.mxu0 0.0
    %617 = vmatprep.mubr.f32.mxu0 0.0
    %618 = vmatmul.mubr.f32.gmra.mrb[0].mxu0 %v551
    %v619 = vpop.f32.mrb[0].mxu0
    %v620 = vadd.f32 %v73, %v619
    %v621 = vpop.f32.mrb[0].mxu0
    %622 = vdwg.mxu0
    %v623 = vxor.u32 %v620, 2147483648
    %v624 = vmul.f32 %v623, 1.442695
    %v625 = vpow.pop %v624
    %v626 = vadd.f32 %v625, 1.0
    %v627 = vrcp.pop %v626
    %v628 = vmul.f32 1.0, %v627
    %v629 = vtanh.pop %v620
    %v630 = vmul.f32 %v628, %v437
    %632 = vrot.lane.b32.xlu0 %v629, 64
    %v633 = vpop.permute.xlu0 %632
    %v635 = vmul.f32 %v628, %v633
    %637 = vrot.lane.b32.xlu0 %v635, 32
    %v638 = vpop.permute.xlu0 %637
    %v640 = vadd.f32 %v630, %v638
    %v641 = vtanh.pop %v640
    %643 = vrot.lane.b32.xlu0 %v641, 64
    %v644 = vpop.permute.xlu0 %643
    %v646 = vmul.f32 %v628, %v644
    %v647 = vsel %vm230, %v543, 0
    %649 = vmatprep.subr.mxu0 0.0
    %650 = vmatpush1.msra.mxu0 %v52
    %651 = vmatprep.subr.mxu0 0.0
    %652 = vmatpush1.msra.mxu0 %v53
    %653 = vmatprep.subr.mxu0 0.0
    %654 = vmatpush1.msra.mxu0 %v54
    %655 = vmatprep.subr.mxu0 0.0
    %656 = vmatpush1.msra.mxu0 %v55
    %657 = vmatprep.subr.mxu0 0.0
    %658 = vmatpush1.msra.mxu0 0.0
    %659 = vmatprep.subr.mxu0 0.0
    %660 = vmatpush1.msra.mxu0 0.0
    %661 = vmatprep.subr.mxu0 0.0
    %662 = vmatpush1.msra.mxu0 0.0
    %663 = vmatprep.subr.mxu0 0.0
    %664 = vmatpush1.msra.mxu0 0.0
    %665 = vmatprep.subr.mxu0 0.0
    %666 = vmatpush1.msra.mxu0 0.0
    %667 = vmatprep.subr.mxu0 0.0
    %668 = vmatpush1.msra.mxu0 0.0
    %669 = vmatprep.subr.mxu0 0.0
    %670 = vmatpush1.msra.mxu0 0.0
    %671 = vmatprep.subr.mxu0 0.0
    %672 = vmatpush1.msra.mxu0 0.0
    %673 = vmatprep.subr.mxu0 0.0
    %674 = vmatpush1.msra.mxu0 0.0
    %675 = vmatprep.subr.mxu0 0.0
    %676 = vmatpush1.msra.mxu0 0.0
    %677 = vmatprep.subr.mxu0 0.0
    %678 = vmatpush1.msra.mxu0 0.0
    %679 = vmatprep.subr.mxu0 0.0
    %680 = vmatpush1.msra.mxu0 0.0
    %681 = vmatprep.subr.mxu0 0.0
    %682 = vmatpush1.msra.mxu0 0.0
    %683 = vmatprep.subr.mxu0 0.0
    %684 = vmatpush1.msra.mxu0 0.0
    %685 = vmatprep.subr.mxu0 0.0
    %686 = vmatpush1.msra.mxu0 0.0
    %687 = vmatprep.subr.mxu0 0.0
    %688 = vmatpush1.msra.mxu0 0.0
    %689 = vmatprep.subr.mxu0 0.0
    %690 = vmatpush1.msra.mxu0 0.0
    %691 = vmatprep.subr.mxu0 0.0
    %692 = vmatpush1.msra.mxu0 0.0
    %693 = vmatprep.subr.mxu0 0.0
    %694 = vmatpush1.msra.mxu0 0.0
    %695 = vmatprep.subr.mxu0 0.0
    %696 = vmatpush1.msra.mxu0 0.0
    %697 = vmatprep.subr.mxu0 0.0
    %698 = vmatpush1.msra.mxu0 0.0
    %699 = vmatprep.subr.mxu0 0.0
    %700 = vmatpush1.msra.mxu0 0.0
    %701 = vmatprep.subr.mxu0 0.0
    %702 = vmatpush1.msra.mxu0 0.0
    %703 = vmatprep.subr.mxu0 0.0
    %704 = vmatpush1.msra.mxu0 0.0
    %705 = vmatprep.subr.mxu0 0.0
    %706 = vmatpush1.msra.mxu0 0.0
    %707 = vmatprep.subr.mxu0 0.0
    %708 = vmatpush1.msra.mxu0 0.0
    %709 = vmatprep.subr.mxu0 0.0
    %710 = vmatpush1.msra.mxu0 0.0
    %711 = vmatprep.subr.mxu0 0.0
    %712 = vmatpush1.msra.mxu0 0.0
    %713 = vmatprep.mubr.f32.mxu0 0.0
    %714 = vmatmul.mubr.f32.gmra.mrb[0].mxu0 %v647
    %v715 = vpop.f32.mrb[0].mxu0
    %v716 = vadd.f32 0.0, %v715
    %v717 = vpop.f32.mrb[0].mxu0
    %718 = vdwg.mxu0
    %v719 = vadd.f32 %v196, %v716
    %v720 = vxor.u32 %v719, 2147483648
    %v721 = vmul.f32 %v720, 1.442695
    %v722 = vpow.pop %v721
    %v723 = vadd.f32 %v722, 1.0
    %v724 = vrcp.pop %v723
    %v725 = vmul.f32 1.0, %v724
    %v726 = vtanh.pop %v719
    %v727 = vmul.f32 %v725, %v534
    %729 = vrot.lane.b32.xlu0 %v726, 64
    %v730 = vpop.permute.xlu0 %729
    %v732 = vmul.f32 %v725, %v730
    %734 = vrot.lane.b32.xlu0 %v732, 32
    %v735 = vpop.permute.xlu0 %734
    %v737 = vadd.f32 %v727, %v735
    %v738 = vtanh.pop %v737
    %740 = vrot.lane.b32.xlu0 %v738, 64
    %v741 = vpop.permute.xlu0 %740
    %v743 = vmul.f32 %v725, %v741
    %745 = vrot.lane.b32.xlu0 %v743, 32
    %v746 = vpop.permute.xlu0 %745
    %749 = vrot.lane.b32.xlu0 %v646, 64
    %v750 = vpop.permute.xlu0 %749
    %v752 = vsel %vm230, %v746, %v750
    %v754 = vsel %vm342, %v752, 0
    %756 = vmatprep.subr.mxu0 0.0
    %757 = vmatpush1.msra.mxu0 %v56
    %758 = vmatprep.subr.mxu0 0.0
    %759 = vmatpush1.msra.mxu0 %v57
    %760 = vmatprep.subr.mxu0 0.0
    %761 = vmatpush1.msra.mxu0 %v58
    %762 = vmatprep.subr.mxu0 0.0
    %763 = vmatpush1.msra.mxu0 %v59
    %764 = vmatprep.subr.mxu0 0.0
    %765 = vmatpush1.msra.mxu0 %v60
    %766 = vmatprep.subr.mxu0 0.0
    %767 = vmatpush1.msra.mxu0 %v61
    %768 = vmatprep.subr.mxu0 0.0
    %769 = vmatpush1.msra.mxu0 %v62
    %770 = vmatprep.subr.mxu0 0.0
    %771 = vmatpush1.msra.mxu0 %v63
    %772 = vmatprep.subr.mxu0 0.0
    %773 = vmatpush1.msra.mxu0 0.0
    %774 = vmatprep.subr.mxu0 0.0
    %775 = vmatpush1.msra.mxu0 0.0
    %776 = vmatprep.subr.mxu0 0.0
    %777 = vmatpush1.msra.mxu0 0.0
    %778 = vmatprep.subr.mxu0 0.0
    %779 = vmatpush1.msra.mxu0 0.0
    %780 = vmatprep.subr.mxu0 0.0
    %781 = vmatpush1.msra.mxu0 0.0
    %782 = vmatprep.subr.mxu0 0.0
    %783 = vmatpush1.msra.mxu0 0.0
    %784 = vmatprep.subr.mxu0 0.0
    %785 = vmatpush1.msra.mxu0 0.0
    %786 = vmatprep.subr.mxu0 0.0
    %787 = vmatpush1.msra.mxu0 0.0
    %788 = vmatprep.subr.mxu0 0.0
    %789 = vmatpush1.msra.mxu0 0.0
    %790 = vmatprep.subr.mxu0 0.0
    %791 = vmatpush1.msra.mxu0 0.0
    %792 = vmatprep.subr.mxu0 0.0
    %793 = vmatpush1.msra.mxu0 0.0
    %794 = vmatprep.subr.mxu0 0.0
    %795 = vmatpush1.msra.mxu0 0.0
    %796 = vmatprep.subr.mxu0 0.0
    %797 = vmatpush1.msra.mxu0 0.0
    %798 = vmatprep.subr.mxu0 0.0
    %799 = vmatpush1.msra.mxu0 0.0
    %800 = vmatprep.subr.mxu0 0.0
    %801 = vmatpush1.msra.mxu0 0.0
    %802 = vmatprep.subr.mxu0 0.0
    %803 = vmatpush1.msra.mxu0 0.0
    %804 = vmatprep.subr.mxu0 0.0
    %805 = vmatpush1.msra.mxu0 0.0
    %806 = vmatprep.subr.mxu0 0.0
    %807 = vmatpush1.msra.mxu0 0.0
    %808 = vmatprep.subr.mxu0 0.0
    %809 = vmatpush1.msra.mxu0 0.0
    %810 = vmatprep.subr.mxu0 0.0
    %811 = vmatpush1.msra.mxu0 0.0
    %812 = vmatprep.subr.mxu0 0.0
    %813 = vmatpush1.msra.mxu0 0.0
    %814 = vmatprep.subr.mxu0 0.0
    %815 = vmatpush1.msra.mxu0 0.0
    %816 = vmatprep.subr.mxu0 0.0
    %817 = vmatpush1.msra.mxu0 0.0
    %818 = vmatprep.subr.mxu0 0.0
    %819 = vmatpush1.msra.mxu0 0.0
    %820 = vmatprep.mubr.f32.mxu0 0.0
    %821 = vmatmul.mubr.f32.gmra.mrb[0].mxu0 %v754
    %v822 = vpop.f32.mrb[0].mxu0
    %v823 = vadd.f32 %v73, %v822
    %v824 = vpop.f32.mrb[0].mxu0
    %825 = vdwg.mxu0
    %v826 = vxor.u32 %v823, 2147483648
    %v827 = vmul.f32 %v826, 1.442695
    %v828 = vpow.pop %v827
    %v829 = vadd.f32 %v828, 1.0
    %v830 = vrcp.pop %v829
    %v831 = vmul.f32 1.0, %v830
    %v832 = vtanh.pop %v823
    %v833 = vmul.f32 %v831, %v640
    %835 = vrot.lane.b32.xlu0 %v832, 64
    %v836 = vpop.permute.xlu0 %835
    %v838 = vmul.f32 %v831, %v836
    %840 = vrot.lane.b32.xlu0 %v838, 32
    %v841 = vpop.permute.xlu0 %840
    %v843 = vadd.f32 %v833, %v841
    %v844 = vtanh.pop %v843
    %846 = vrot.lane.b32.xlu0 %v844, 64
    %v847 = vpop.permute.xlu0 %846
    %v849 = vmul.f32 %v831, %v847
    %v850 = vsel %vm230, %v746, 0
    %852 = vmatprep.subr.mxu0 0.0
    %853 = vmatpush1.msra.mxu0 %v52
    %854 = vmatprep.subr.mxu0 0.0
    %855 = vmatpush1.msra.mxu0 %v53
    %856 = vmatprep.subr.mxu0 0.0
    %857 = vmatpush1.msra.mxu0 %v54
    %858 = vmatprep.subr.mxu0 0.0
    %859 = vmatpush1.msra.mxu0 %v55
    %860 = vmatprep.subr.mxu0 0.0
    %861 = vmatpush1.msra.mxu0 0.0
    %862 = vmatprep.subr.mxu0 0.0
    %863 = vmatpush1.msra.mxu0 0.0
    %864 = vmatprep.subr.mxu0 0.0
    %865 = vmatpush1.msra.mxu0 0.0
    %866 = vmatprep.subr.mxu0 0.0
    %867 = vmatpush1.msra.mxu0 0.0
    %868 = vmatprep.subr.mxu0 0.0
    %869 = vmatpush1.msra.mxu0 0.0
    %870 = vmatprep.subr.mxu0 0.0
    %871 = vmatpush1.msra.mxu0 0.0
    %872 = vmatprep.subr.mxu0 0.0
    %873 = vmatpush1.msra.mxu0 0.0
    %874 = vmatprep.subr.mxu0 0.0
    %875 = vmatpush1.msra.mxu0 0.0
    %876 = vmatprep.subr.mxu0 0.0
    %877 = vmatpush1.msra.mxu0 0.0
    %878 = vmatprep.subr.mxu0 0.0
    %879 = vmatpush1.msra.mxu0 0.0
    %880 = vmatprep.subr.mxu0 0.0
    %881 = vmatpush1.msra.mxu0 0.0
    %882 = vmatprep.subr.mxu0 0.0
    %883 = vmatpush1.msra.mxu0 0.0
    %884 = vmatprep.subr.mxu0 0.0
    %885 = vmatpush1.msra.mxu0 0.0
    %886 = vmatprep.subr.mxu0 0.0
    %887 = vmatpush1.msra.mxu0 0.0
    %888 = vmatprep.subr.mxu0 0.0
    %889 = vmatpush1.msra.mxu0 0.0
    %890 = vmatprep.subr.mxu0 0.0
    %891 = vmatpush1.msra.mxu0 0.0
    %892 = vmatprep.subr.mxu0 0.0
    %893 = vmatpush1.msra.mxu0 0.0
    %894 = vmatprep.subr.mxu0 0.0
    %895 = vmatpush1.msra.mxu0 0.0
    %896 = vmatprep.subr.mxu0 0.0
    %897 = vmatpush1.msra.mxu0 0.0
    %898 = vmatprep.subr.mxu0 0.0
    %899 = vmatpush1.msra.mxu0 0.0
    %900 = vmatprep.subr.mxu0 0.0
    %901 = vmatpush1.msra.mxu0 0.0
    %902 = vmatprep.subr.mxu0 0.0
    %903 = vmatpush1.msra.mxu0 0.0
    %904 = vmatprep.subr.mxu0 0.0
    %905 = vmatpush1.msra.mxu0 0.0
    %906 = vmatprep.subr.mxu0 0.0
    %907 = vmatpush1.msra.mxu0 0.0
    %908 = vmatprep.subr.mxu0 0.0
    %909 = vmatpush1.msra.mxu0 0.0
    %910 = vmatprep.subr.mxu0 0.0
    %911 = vmatpush1.msra.mxu0 0.0
    %912 = vmatprep.subr.mxu0 0.0
    %913 = vmatpush1.msra.mxu0 0.0
    %914 = vmatprep.subr.mxu0 0.0
    %915 = vmatpush1.msra.mxu0 0.0
    %916 = vmatprep.mubr.f32.mxu0 0.0
    %917 = vmatmul.mubr.f32.gmra.mrb[0].mxu0 %v850
    %v918 = vpop.f32.mrb[0].mxu0
    %v919 = vadd.f32 0.0, %v918
    %v920 = vpop.f32.mrb[0].mxu0
    %921 = vdwg.mxu0
    %v922 = vadd.f32 %v201, %v919
    %v923 = vxor.u32 %v922, 2147483648
    %v924 = vmul.f32 %v923, 1.442695
    %v925 = vpow.pop %v924
    %v926 = vadd.f32 %v925, 1.0
    %v927 = vrcp.pop %v926
    %v928 = vmul.f32 1.0, %v927
    %v929 = vtanh.pop %v922
    %v930 = vmul.f32 %v928, %v737
    %932 = vrot.lane.b32.xlu0 %v929, 64
    %v933 = vpop.permute.xlu0 %932
    %v935 = vmul.f32 %v928, %v933
    %937 = vrot.lane.b32.xlu0 %v935, 32
    %v938 = vpop.permute.xlu0 %937
    %v940 = vadd.f32 %v930, %v938
    %v941 = vtanh.pop %v940
    %943 = vrot.lane.b32.xlu0 %v941, 64
    %v944 = vpop.permute.xlu0 %943
    %v946 = vmul.f32 %v928, %v944
    %948 = vrot.lane.b32.xlu0 %v946, 32
    %v949 = vpop.permute.xlu0 %948
    %952 = vrot.lane.b32.xlu0 %v849, 64
    %v953 = vpop.permute.xlu0 %952
    %v955 = vsel %vm230, %v949, %v953
    %v957 = vsel %vm342, %v955, 0
    %959 = vmatprep.subr.mxu0 0.0
    %960 = vmatpush1.msra.mxu0 %v56
    %961 = vmatprep.subr.mxu0 0.0
    %962 = vmatpush1.msra.mxu0 %v57
    %963 = vmatprep.subr.mxu0 0.0
    %964 = vmatpush1.msra.mxu0 %v58
    %965 = vmatprep.subr.mxu0 0.0
    %966 = vmatpush1.msra.mxu0 %v59
    %967 = vmatprep.subr.mxu0 0.0
    %968 = vmatpush1.msra.mxu0 %v60
    %969 = vmatprep.subr.mxu0 0.0
    %970 = vmatpush1.msra.mxu0 %v61
    %971 = vmatprep.subr.mxu0 0.0
    %972 = vmatpush1.msra.mxu0 %v62
    %973 = vmatprep.subr.mxu0 0.0
    %974 = vmatpush1.msra.mxu0 %v63
    %975 = vmatprep.subr.mxu0 0.0
    %976 = vmatpush1.msra.mxu0 0.0
    %977 = vmatprep.subr.mxu0 0.0
    %978 = vmatpush1.msra.mxu0 0.0
    %979 = vmatprep.subr.mxu0 0.0
    %980 = vmatpush1.msra.mxu0 0.0
    %981 = vmatprep.subr.mxu0 0.0
    %982 = vmatpush1.msra.mxu0 0.0
    %983 = vmatprep.subr.mxu0 0.0
    %984 = vmatpush1.msra.mxu0 0.0
    %985 = vmatprep.subr.mxu0 0.0
    %986 = vmatpush1.msra.mxu0 0.0
    %987 = vmatprep.subr.mxu0 0.0
    %988 = vmatpush1.msra.mxu0 0.0
    %989 = vmatprep.subr.mxu0 0.0
    %990 = vmatpush1.msra.mxu0 0.0
    %991 = vmatprep.subr.mxu0 0.0
    %992 = vmatpush1.msra.mxu0 0.0
    %993 = vmatprep.subr.mxu0 0.0
    %994 = vmatpush1.msra.mxu0 0.0
    %995 = vmatprep.subr.mxu0 0.0
    %996 = vmatpush1.msra.mxu0 0.0
    %997 = vmatprep.subr.mxu0 0.0
    %998 = vmatpush1.msra.mxu0 0.0
    %999 = vmatprep.subr.mxu0 0.0
    %1000 = vmatpush1.msra.mxu0 0.0
    %1001 = vmatprep.subr.mxu0 0.0
    %1002 = vmatpush1.msra.mxu0 0.0
    %1003 = vmatprep.subr.mxu0 0.0
    %1004 = vmatpush1.msra.mxu0 0.0
    %1005 = vmatprep.subr.mxu0 0.0
    %1006 = vmatpush1.msra.mxu0 0.0
    %1007 = vmatprep.subr.mxu0 0.0
    %1008 = vmatpush1.msra.mxu0 0.0
    %1009 = vmatprep.subr.mxu0 0.0
    %1010 = vmatpush1.msra.mxu0 0.0
    %1011 = vmatprep.subr.mxu0 0.0
    %1012 = vmatpush1.msra.mxu0 0.0
    %1013 = vmatprep.subr.mxu0 0.0
    %1014 = vmatpush1.msra.mxu0 0.0
    %1015 = vmatprep.subr.mxu0 0.0
    %1016 = vmatpush1.msra.mxu0 0.0
    %1017 = vmatprep.subr.mxu0 0.0
    %1018 = vmatpush1.msra.mxu0 0.0
    %1019 = vmatprep.subr.mxu0 0.0
    %1020 = vmatpush1.msra.mxu0 0.0
    %1021 = vmatprep.subr.mxu0 0.0
    %1022 = vmatpush1.msra.mxu0 0.0
    %1023 = vmatprep.mubr.f32.mxu0 0.0
    %1024 = vmatmul.mubr.f32.gmra.mrb[0].mxu0 %v957
    %v1025 = vpop.f32.mrb[0].mxu0
    %v1026 = vadd.f32 %v73, %v1025
    %v1027 = vpop.f32.mrb[0].mxu0
    %1028 = vdwg.mxu0
    %v1029 = vxor.u32 %v1026, 2147483648
    %v1030 = vmul.f32 %v1029, 1.442695
    %v1031 = vpow.pop %v1030
    %v1032 = vadd.f32 %v1031, 1.0
    %v1033 = vrcp.pop %v1032
    %v1034 = vmul.f32 1.0, %v1033
    %v1035 = vtanh.pop %v1026
    %v1036 = vmul.f32 %v1034, %v843
    %1038 = vrot.lane.b32.xlu0 %v1035, 64
    %v1039 = vpop.permute.xlu0 %1038
    %v1041 = vmul.f32 %v1034, %v1039
    %1043 = vrot.lane.b32.xlu0 %v1041, 32
    %v1044 = vpop.permute.xlu0 %1043
    %v1046 = vadd.f32 %v1036, %v1044
    %v1047 = vtanh.pop %v1046
    %1049 = vrot.lane.b32.xlu0 %v1047, 64
    %v1050 = vpop.permute.xlu0 %1049
    %v1052 = vmul.f32 %v1034, %v1050
    %v1053 = vsel %vm230, %v949, 0
    %1055 = vmatprep.subr.mxu0 0.0
    %1056 = vmatpush1.msra.mxu0 %v52
    %1057 = vmatprep.subr.mxu0 0.0
    %1058 = vmatpush1.msra.mxu0 %v53
    %1059 = vmatprep.subr.mxu0 0.0
    %1060 = vmatpush1.msra.mxu0 %v54
    %1061 = vmatprep.subr.mxu0 0.0
    %1062 = vmatpush1.msra.mxu0 %v55
    %1063 = vmatprep.subr.mxu0 0.0
    %1064 = vmatpush1.msra.mxu0 0.0
    %1065 = vmatprep.subr.mxu0 0.0
    %1066 = vmatpush1.msra.mxu0 0.0
    %1067 = vmatprep.subr.mxu0 0.0
    %1068 = vmatpush1.msra.mxu0 0.0
    %1069 = vmatprep.subr.mxu0 0.0
    %1070 = vmatpush1.msra.mxu0 0.0
    %1071 = vmatprep.subr.mxu0 0.0
    %1072 = vmatpush1.msra.mxu0 0.0
    %1073 = vmatprep.subr.mxu0 0.0
    %1074 = vmatpush1.msra.mxu0 0.0
    %1075 = vmatprep.subr.mxu0 0.0
    %1076 = vmatpush1.msra.mxu0 0.0
    %1077 = vmatprep.subr.mxu0 0.0
    %1078 = vmatpush1.msra.mxu0 0.0
    %1079 = vmatprep.subr.mxu0 0.0
    %1080 = vmatpush1.msra.mxu0 0.0
    %1081 = vmatprep.subr.mxu0 0.0
    %1082 = vmatpush1.msra.mxu0 0.0
    %1083 = vmatprep.subr.mxu0 0.0
    %1084 = vmatpush1.msra.mxu0 0.0
    %1085 = vmatprep.subr.mxu0 0.0
    %1086 = vmatpush1.msra.mxu0 0.0
    %1087 = vmatprep.subr.mxu0 0.0
    %1088 = vmatpush1.msra.mxu0 0.0
    %1089 = vmatprep.subr.mxu0 0.0
    %1090 = vmatpush1.msra.mxu0 0.0
    %1091 = vmatprep.subr.mxu0 0.0
    %1092 = vmatpush1.msra.mxu0 0.0
    %1093 = vmatprep.subr.mxu0 0.0
    %1094 = vmatpush1.msra.mxu0 0.0
    %1095 = vmatprep.subr.mxu0 0.0
    %1096 = vmatpush1.msra.mxu0 0.0
    %1097 = vmatprep.subr.mxu0 0.0
    %1098 = vmatpush1.msra.mxu0 0.0
    %1099 = vmatprep.subr.mxu0 0.0
    %1100 = vmatpush1.msra.mxu0 0.0
    %1101 = vmatprep.subr.mxu0 0.0
    %1102 = vmatpush1.msra.mxu0 0.0
    %1103 = vmatprep.subr.mxu0 0.0
    %1104 = vmatpush1.msra.mxu0 0.0
    %1105 = vmatprep.subr.mxu0 0.0
    %1106 = vmatpush1.msra.mxu0 0.0
    %1107 = vmatprep.subr.mxu0 0.0
    %1108 = vmatpush1.msra.mxu0 0.0
    %1109 = vmatprep.subr.mxu0 0.0
    %1110 = vmatpush1.msra.mxu0 0.0
    %1111 = vmatprep.subr.mxu0 0.0
    %1112 = vmatpush1.msra.mxu0 0.0
    %1113 = vmatprep.subr.mxu0 0.0
    %1114 = vmatpush1.msra.mxu0 0.0
    %1115 = vmatprep.subr.mxu0 0.0
    %1116 = vmatpush1.msra.mxu0 0.0
    %1117 = vmatprep.subr.mxu0 0.0
    %1118 = vmatpush1.msra.mxu0 0.0
    %1119 = vmatprep.mubr.f32.mxu0 0.0
    %1120 = vmatmul.mubr.f32.gmra.mrb[0].mxu0 %v1053
    %v1121 = vpop.f32.mrb[0].mxu0
    %v1122 = vadd.f32 0.0, %v1121
    %v1123 = vpop.f32.mrb[0].mxu0
    %1124 = vdwg.mxu0
    %v1125 = vadd.f32 %v206, %v1122
    %v1126 = vxor.u32 %v1125, 2147483648
    %v1127 = vmul.f32 %v1126, 1.442695
    %v1128 = vpow.pop %v1127
    %v1129 = vadd.f32 %v1128, 1.0
    %v1130 = vrcp.pop %v1129
    %v1131 = vmul.f32 1.0, %v1130
    %v1132 = vtanh.pop %v1125
    %v1133 = vmul.f32 %v1131, %v940
    %1135 = vrot.lane.b32.xlu0 %v1132, 64
    %v1136 = vpop.permute.xlu0 %1135
    %v1138 = vmul.f32 %v1131, %v1136
    %1140 = vrot.lane.b32.xlu0 %v1138, 32
    %v1141 = vpop.permute.xlu0 %1140
    %v1143 = vadd.f32 %v1133, %v1141
    %v1144 = vtanh.pop %v1143
    %1146 = vrot.lane.b32.xlu0 %v1144, 64
    %v1147 = vpop.permute.xlu0 %1146
    %v1149 = vmul.f32 %v1131, %v1147
    %1151 = vrot.lane.b32.xlu0 %v1149, 32
    %v1152 = vpop.permute.xlu0 %1151
    %1155 = vrot.lane.b32.xlu0 %v1052, 64
    %v1156 = vpop.permute.xlu0 %1155
    %v1158 = vsel %vm230, %v1152, %v1156
    %v1160 = vsel %vm342, %v1158, 0
    %1162 = vmatprep.subr.mxu0 0.0
    %1163 = vmatpush1.msra.mxu0 %v56
    %1164 = vmatprep.subr.mxu0 0.0
    %1165 = vmatpush1.msra.mxu0 %v57
    %1166 = vmatprep.subr.mxu0 0.0
    %1167 = vmatpush1.msra.mxu0 %v58
    %1168 = vmatprep.subr.mxu0 0.0
    %1169 = vmatpush1.msra.mxu0 %v59
    %1170 = vmatprep.subr.mxu0 0.0
    %1171 = vmatpush1.msra.mxu0 %v60
    %1172 = vmatprep.subr.mxu0 0.0
    %1173 = vmatpush1.msra.mxu0 %v61
    %1174 = vmatprep.subr.mxu0 0.0
    %1175 = vmatpush1.msra.mxu0 %v62
    %1176 = vmatprep.subr.mxu0 0.0
    %1177 = vmatpush1.msra.mxu0 %v63
    %1178 = vmatprep.subr.mxu0 0.0
    %1179 = vmatpush1.msra.mxu0 0.0
    %1180 = vmatprep.subr.mxu0 0.0
    %1181 = vmatpush1.msra.mxu0 0.0
    %1182 = vmatprep.subr.mxu0 0.0
    %1183 = vmatpush1.msra.mxu0 0.0
    %1184 = vmatprep.subr.mxu0 0.0
    %1185 = vmatpush1.msra.mxu0 0.0
    %1186 = vmatprep.subr.mxu0 0.0
    %1187 = vmatpush1.msra.mxu0 0.0
    %1188 = vmatprep.subr.mxu0 0.0
    %1189 = vmatpush1.msra.mxu0 0.0
    %1190 = vmatprep.subr.mxu0 0.0
    %1191 = vmatpush1.msra.mxu0 0.0
    %1192 = vmatprep.subr.mxu0 0.0
    %1193 = vmatpush1.msra.mxu0 0.0
    %1194 = vmatprep.subr.mxu0 0.0
    %1195 = vmatpush1.msra.mxu0 0.0
    %1196 = vmatprep.subr.mxu0 0.0
    %1197 = vmatpush1.msra.mxu0 0.0
    %1198 = vmatprep.subr.mxu0 0.0
    %1199 = vmatpush1.msra.mxu0 0.0
    %1200 = vmatprep.subr.mxu0 0.0
    %1201 = vmatpush1.msra.mxu0 0.0
    %1202 = vmatprep.subr.mxu0 0.0
    %1203 = vmatpush1.msra.mxu0 0.0
    %1204 = vmatprep.subr.mxu0 0.0
    %1205 = vmatpush1.msra.mxu0 0.0
    %1206 = vmatprep.subr.mxu0 0.0
    %1207 = vmatpush1.msra.mxu0 0.0
    %1208 = vmatprep.subr.mxu0 0.0
    %1209 = vmatpush1.msra.mxu0 0.0
    %1210 = vmatprep.subr.mxu0 0.0
    %1211 = vmatpush1.msra.mxu0 0.0
    %1212 = vmatprep.subr.mxu0 0.0
    %1213 = vmatpush1.msra.mxu0 0.0
    %1214 = vmatprep.subr.mxu0 0.0
    %1215 = vmatpush1.msra.mxu0 0.0
    %1216 = vmatprep.subr.mxu0 0.0
    %1217 = vmatpush1.msra.mxu0 0.0
    %1218 = vmatprep.subr.mxu0 0.0
    %1219 = vmatpush1.msra.mxu0 0.0
    %1220 = vmatprep.subr.mxu0 0.0
    %1221 = vmatpush1.msra.mxu0 0.0
    %1222 = vmatprep.subr.mxu0 0.0
    %1223 = vmatpush1.msra.mxu0 0.0
    %1224 = vmatprep.subr.mxu0 0.0
    %1225 = vmatpush1.msra.mxu0 0.0
    %1226 = vmatprep.mubr.f32.mxu0 0.0
    %1227 = vmatmul.mubr.f32.gmra.mrb[0].mxu0 %v1160
    %v1228 = vpop.f32.mrb[0].mxu0
    %v1229 = vadd.f32 %v73, %v1228
    %v1230 = vpop.f32.mrb[0].mxu0
    %1231 = vdwg.mxu0
    %v1232 = vxor.u32 %v1229, 2147483648
    %v1233 = vmul.f32 %v1232, 1.442695
    %v1234 = vpow.pop %v1233
    %v1235 = vadd.f32 %v1234, 1.0
    %v1236 = vrcp.pop %v1235
    %v1237 = vmul.f32 1.0, %v1236
    %v1238 = vtanh.pop %v1229
    %v1239 = vmul.f32 %v1237, %v1046
    %1241 = vrot.lane.b32.xlu0 %v1238, 64
    %v1242 = vpop.permute.xlu0 %1241
    %v1244 = vmul.f32 %v1237, %v1242
    %1246 = vrot.lane.b32.xlu0 %v1244, 32
    %v1247 = vpop.permute.xlu0 %1246
    %v1249 = vadd.f32 %v1239, %v1247
    %v1250 = vtanh.pop %v1249
    %1252 = vrot.lane.b32.xlu0 %v1250, 64
    %v1253 = vpop.permute.xlu0 %1252
    %v1255 = vmul.f32 %v1237, %v1253
    %v1256 = vsel %vm230, %v1152, 0
    %1258 = vmatprep.subr.mxu0 0.0
    %1259 = vmatpush1.msra.mxu0 %v52
    %1260 = vmatprep.subr.mxu0 0.0
    %1261 = vmatpush1.msra.mxu0 %v53
    %1262 = vmatprep.subr.mxu0 0.0
    %1263 = vmatpush1.msra.mxu0 %v54
    %1264 = vmatprep.subr.mxu0 0.0
    %1265 = vmatpush1.msra.mxu0 %v55
    %1266 = vmatprep.subr.mxu0 0.0
    %1267 = vmatpush1.msra.mxu0 0.0
    %1268 = vmatprep.subr.mxu0 0.0
    %1269 = vmatpush1.msra.mxu0 0.0
    %1270 = vmatprep.subr.mxu0 0.0
    %1271 = vmatpush1.msra.mxu0 0.0
    %1272 = vmatprep.subr.mxu0 0.0
    %1273 = vmatpush1.msra.mxu0 0.0
    %1274 = vmatprep.subr.mxu0 0.0
    %1275 = vmatpush1.msra.mxu0 0.0
    %1276 = vmatprep.subr.mxu0 0.0
    %1277 = vmatpush1.msra.mxu0 0.0
    %1278 = vmatprep.subr.mxu0 0.0
    %1279 = vmatpush1.msra.mxu0 0.0
    %1280 = vmatprep.subr.mxu0 0.0
    %1281 = vmatpush1.msra.mxu0 0.0
    %1282 = vmatprep.subr.mxu0 0.0
    %1283 = vmatpush1.msra.mxu0 0.0
    %1284 = vmatprep.subr.mxu0 0.0
    %1285 = vmatpush1.msra.mxu0 0.0
    %1286 = vmatprep.subr.mxu0 0.0
    %1287 = vmatpush1.msra.mxu0 0.0
    %1288 = vmatprep.subr.mxu0 0.0
    %1289 = vmatpush1.msra.mxu0 0.0
    %1290 = vmatprep.subr.mxu0 0.0
    %1291 = vmatpush1.msra.mxu0 0.0
    %1292 = vmatprep.subr.mxu0 0.0
    %1293 = vmatpush1.msra.mxu0 0.0
    %1294 = vmatprep.subr.mxu0 0.0
    %1295 = vmatpush1.msra.mxu0 0.0
    %1296 = vmatprep.subr.mxu0 0.0
    %1297 = vmatpush1.msra.mxu0 0.0
    %1298 = vmatprep.subr.mxu0 0.0
    %1299 = vmatpush1.msra.mxu0 0.0
    %1300 = vmatprep.subr.mxu0 0.0
    %1301 = vmatpush1.msra.mxu0 0.0
    %1302 = vmatprep.subr.mxu0 0.0
    %1303 = vmatpush1.msra.mxu0 0.0
    %1304 = vmatprep.subr.mxu0 0.0
    %1305 = vmatpush1.msra.mxu0 0.0
    %1306 = vmatprep.subr.mxu0 0.0
    %1307 = vmatpush1.msra.mxu0 0.0
    %1308 = vmatprep.subr.mxu0 0.0
    %1309 = vmatpush1.msra.mxu0 0.0
    %1310 = vmatprep.subr.mxu0 0.0
    %1311 = vmatpush1.msra.mxu0 0.0
    %1312 = vmatprep.subr.mxu0 0.0
    %1313 = vmatpush1.msra.mxu0 0.0
    %1314 = vmatprep.subr.mxu0 0.0
    %1315 = vmatpush1.msra.mxu0 0.0
    %1316 = vmatprep.subr.mxu0 0.0
    %1317 = vmatpush1.msra.mxu0 0.0
    %1318 = vmatprep.subr.mxu0 0.0
    %1319 = vmatpush1.msra.mxu0 0.0
    %1320 = vmatprep.subr.mxu0 0.0
    %1321 = vmatpush1.msra.mxu0 0.0
    %1322 = vmatprep.mubr.f32.mxu0 0.0
    %1323 = vmatmul.mubr.f32.gmra.mrb[0].mxu0 %v1256
    %v1324 = vpop.f32.mrb[0].mxu0
    %v1325 = vadd.f32 0.0, %v1324
    %v1326 = vpop.f32.mrb[0].mxu0
    %1327 = vdwg.mxu0
    %v1328 = vadd.f32 %v211, %v1325
    %v1329 = vxor.u32 %v1328, 2147483648
    %v1330 = vmul.f32 %v1329, 1.442695
    %v1331 = vpow.pop %v1330
    %v1332 = vadd.f32 %v1331, 1.0
    %v1333 = vrcp.pop %v1332
    %v1334 = vmul.f32 1.0, %v1333
    %v1335 = vtanh.pop %v1328
    %v1336 = vmul.f32 %v1334, %v1143
    %1338 = vrot.lane.b32.xlu0 %v1335, 64
    %v1339 = vpop.permute.xlu0 %1338
    %v1341 = vmul.f32 %v1334, %v1339
    %1343 = vrot.lane.b32.xlu0 %v1341, 32
    %v1344 = vpop.permute.xlu0 %1343
    %v1346 = vadd.f32 %v1336, %v1344
    %v1347 = vtanh.pop %v1346
    %1349 = vrot.lane.b32.xlu0 %v1347, 64
    %v1350 = vpop.permute.xlu0 %1349
    %v1352 = vmul.f32 %v1334, %v1350
    %1354 = vrot.lane.b32.xlu0 %v1352, 32
    %v1355 = vpop.permute.xlu0 %1354
    %1358 = vrot.lane.b32.xlu0 %v1255, 64
    %v1359 = vpop.permute.xlu0 %1358
    %v1361 = vsel %vm230, %v1355, %v1359
    %v1363 = vsel %vm342, %v1361, 0
    %1365 = vmatprep.subr.mxu0 0.0
    %1366 = vmatpush1.msra.mxu0 %v56
    %1367 = vmatprep.subr.mxu0 0.0
    %1368 = vmatpush1.msra.mxu0 %v57
    %1369 = vmatprep.subr.mxu0 0.0
    %1370 = vmatpush1.msra.mxu0 %v58
    %1371 = vmatprep.subr.mxu0 0.0
    %1372 = vmatpush1.msra.mxu0 %v59
    %1373 = vmatprep.subr.mxu0 0.0
    %1374 = vmatpush1.msra.mxu0 %v60
    %1375 = vmatprep.subr.mxu0 0.0
    %1376 = vmatpush1.msra.mxu0 %v61
    %1377 = vmatprep.subr.mxu0 0.0
    %1378 = vmatpush1.msra.mxu0 %v62
    %1379 = vmatprep.subr.mxu0 0.0
    %1380 = vmatpush1.msra.mxu0 %v63
    %1381 = vmatprep.subr.mxu0 0.0
    %1382 = vmatpush1.msra.mxu0 0.0
    %1383 = vmatprep.subr.mxu0 0.0
    %1384 = vmatpush1.msra.mxu0 0.0
    %1385 = vmatprep.subr.mxu0 0.0
    %1386 = vmatpush1.msra.mxu0 0.0
    %1387 = vmatprep.subr.mxu0 0.0
    %1388 = vmatpush1.msra.mxu0 0.0
    %1389 = vmatprep.subr.mxu0 0.0
    %1390 = vmatpush1.msra.mxu0 0.0
    %1391 = vmatprep.subr.mxu0 0.0
    %1392 = vmatpush1.msra.mxu0 0.0
    %1393 = vmatprep.subr.mxu0 0.0
    %1394 = vmatpush1.msra.mxu0 0.0
    %1395 = vmatprep.subr.mxu0 0.0
    %1396 = vmatpush1.msra.mxu0 0.0
    %1397 = vmatprep.subr.mxu0 0.0
    %1398 = vmatpush1.msra.mxu0 0.0
    %1399 = vmatprep.subr.mxu0 0.0
    %1400 = vmatpush1.msra.mxu0 0.0
    %1401 = vmatprep.subr.mxu0 0.0
    %1402 = vmatpush1.msra.mxu0 0.0
    %1403 = vmatprep.subr.mxu0 0.0
    %1404 = vmatpush1.msra.mxu0 0.0
    %1405 = vmatprep.subr.mxu0 0.0
    %1406 = vmatpush1.msra.mxu0 0.0
    %1407 = vmatprep.subr.mxu0 0.0
    %1408 = vmatpush1.msra.mxu0 0.0
    %1409 = vmatprep.subr.mxu0 0.0
    %1410 = vmatpush1.msra.mxu0 0.0
    %1411 = vmatprep.subr.mxu0 0.0
    %1412 = vmatpush1.msra.mxu0 0.0
    %1413 = vmatprep.subr.mxu0 0.0
    %1414 = vmatpush1.msra.mxu0 0.0
    %1415 = vmatprep.subr.mxu0 0.0
    %1416 = vmatpush1.msra.mxu0 0.0
    %1417 = vmatprep.subr.mxu0 0.0
    %1418 = vmatpush1.msra.mxu0 0.0
    %1419 = vmatprep.subr.mxu0 0.0
    %1420 = vmatpush1.msra.mxu0 0.0
    %1421 = vmatprep.subr.mxu0 0.0
    %1422 = vmatpush1.msra.mxu0 0.0
    %1423 = vmatprep.subr.mxu0 0.0
    %1424 = vmatpush1.msra.mxu0 0.0
    %1425 = vmatprep.subr.mxu0 0.0
    %1426 = vmatpush1.msra.mxu0 0.0
    %1427 = vmatprep.subr.mxu0 0.0
    %1428 = vmatpush1.msra.mxu0 0.0
    %1429 = vmatprep.mubr.f32.mxu0 0.0
    %1430 = vmatmul.mubr.f32.gmra.mrb[0].mxu0 %v1363
    %v1431 = vpop.f32.mrb[0].mxu0
    %v1432 = vadd.f32 %v73, %v1431
    %v1433 = vpop.f32.mrb[0].mxu0
    %1434 = vdwg.mxu0
    %v1435 = vxor.u32 %v1432, 2147483648
    %v1436 = vmul.f32 %v1435, 1.442695
    %v1437 = vpow.pop %v1436
    %v1438 = vadd.f32 %v1437, 1.0
    %v1439 = vrcp.pop %v1438
    %v1440 = vmul.f32 1.0, %v1439
    %v1441 = vtanh.pop %v1432
    %v1442 = vmul.f32 %v1440, %v1249
    %1444 = vrot.lane.b32.xlu0 %v1441, 64
    %v1445 = vpop.permute.xlu0 %1444
    %v1447 = vmul.f32 %v1440, %v1445
    %1449 = vrot.lane.b32.xlu0 %v1447, 32
    %v1450 = vpop.permute.xlu0 %1449
    %v1452 = vadd.f32 %v1442, %v1450
    %v1453 = vtanh.pop %v1452
    %1455 = vrot.lane.b32.xlu0 %v1453, 64
    %v1456 = vpop.permute.xlu0 %1455
    %v1458 = vmul.f32 %v1440, %v1456
    %v1459 = vsel %vm230, %v1355, 0
    %1461 = vmatprep.subr.mxu0 0.0
    %1462 = vmatpush1.msra.mxu0 %v52
    %1463 = vmatprep.subr.mxu0 0.0
    %1464 = vmatpush1.msra.mxu0 %v53
    %1465 = vmatprep.subr.mxu0 0.0
    %1466 = vmatpush1.msra.mxu0 %v54
    %1467 = vmatprep.subr.mxu0 0.0
    %1468 = vmatpush1.msra.mxu0 %v55
    %1469 = vmatprep.subr.mxu0 0.0
    %1470 = vmatpush1.msra.mxu0 0.0
    %1471 = vmatprep.subr.mxu0 0.0
    %1472 = vmatpush1.msra.mxu0 0.0
    %1473 = vmatprep.subr.mxu0 0.0
    %1474 = vmatpush1.msra.mxu0 0.0
    %1475 = vmatprep.subr.mxu0 0.0
    %1476 = vmatpush1.msra.mxu0 0.0
    %1477 = vmatprep.subr.mxu0 0.0
    %1478 = vmatpush1.msra.mxu0 0.0
    %1479 = vmatprep.subr.mxu0 0.0
    %1480 = vmatpush1.msra.mxu0 0.0
    %1481 = vmatprep.subr.mxu0 0.0
    %1482 = vmatpush1.msra.mxu0 0.0
    %1483 = vmatprep.subr.mxu0 0.0
    %1484 = vmatpush1.msra.mxu0 0.0
    %1485 = vmatprep.subr.mxu0 0.0
    %1486 = vmatpush1.msra.mxu0 0.0
    %1487 = vmatprep.subr.mxu0 0.0
    %1488 = vmatpush1.msra.mxu0 0.0
    %1489 = vmatprep.subr.mxu0 0.0
    %1490 = vmatpush1.msra.mxu0 0.0
    %1491 = vmatprep.subr.mxu0 0.0
    %1492 = vmatpush1.msra.mxu0 0.0
    %1493 = vmatprep.subr.mxu0 0.0
    %1494 = vmatpush1.msra.mxu0 0.0
    %1495 = vmatprep.subr.mxu0 0.0
    %1496 = vmatpush1.msra.mxu0 0.0
    %1497 = vmatprep.subr.mxu0 0.0
    %1498 = vmatpush1.msra.mxu0 0.0
    %1499 = vmatprep.subr.mxu0 0.0
    %1500 = vmatpush1.msra.mxu0 0.0
    %1501 = vmatprep.subr.mxu0 0.0
    %1502 = vmatpush1.msra.mxu0 0.0
    %1503 = vmatprep.subr.mxu0 0.0
    %1504 = vmatpush1.msra.mxu0 0.0
    %1505 = vmatprep.subr.mxu0 0.0
    %1506 = vmatpush1.msra.mxu0 0.0
    %1507 = vmatprep.subr.mxu0 0.0
    %1508 = vmatpush1.msra.mxu0 0.0
    %1509 = vmatprep.subr.mxu0 0.0
    %1510 = vmatpush1.msra.mxu0 0.0
    %1511 = vmatprep.subr.mxu0 0.0
    %1512 = vmatpush1.msra.mxu0 0.0
    %1513 = vmatprep.subr.mxu0 0.0
    %1514 = vmatpush1.msra.mxu0 0.0
    %1515 = vmatprep.subr.mxu0 0.0
    %1516 = vmatpush1.msra.mxu0 0.0
    %1517 = vmatprep.subr.mxu0 0.0
    %1518 = vmatpush1.msra.mxu0 0.0
    %1519 = vmatprep.subr.mxu0 0.0
    %1520 = vmatpush1.msra.mxu0 0.0
    %1521 = vmatprep.subr.mxu0 0.0
    %1522 = vmatpush1.msra.mxu0 0.0
    %1523 = vmatprep.subr.mxu0 0.0
    %1524 = vmatpush1.msra.mxu0 0.0
    %1525 = vmatprep.mubr.f32.mxu0 0.0
    %1526 = vmatmul.mubr.f32.gmra.mrb[0].mxu0 %v1459
    %v1527 = vpop.f32.mrb[0].mxu0
    %v1528 = vadd.f32 0.0, %v1527
    %v1529 = vpop.f32.mrb[0].mxu0
    %1530 = vdwg.mxu0
    %v1531 = vadd.f32 %v216, %v1528
    %v1532 = vxor.u32 %v1531, 2147483648
    %v1533 = vmul.f32 %v1532, 1.442695
    %v1534 = vpow.pop %v1533
    %v1535 = vadd.f32 %v1534, 1.0
    %v1536 = vrcp.pop %v1535
    %v1537 = vmul.f32 1.0, %v1536
    %v1538 = vtanh.pop %v1531
    %v1539 = vmul.f32 %v1537, %v1346
    %1541 = vrot.lane.b32.xlu0 %v1538, 64
    %v1542 = vpop.permute.xlu0 %1541
    %v1544 = vmul.f32 %v1537, %v1542
    %1546 = vrot.lane.b32.xlu0 %v1544, 32
    %v1547 = vpop.permute.xlu0 %1546
    %v1549 = vadd.f32 %v1539, %v1547
    %v1550 = vtanh.pop %v1549
    %1552 = vrot.lane.b32.xlu0 %v1550, 64
    %v1553 = vpop.permute.xlu0 %1552
    %v1555 = vmul.f32 %v1537, %v1553
    %1557 = vrot.lane.b32.xlu0 %v1555, 32
    %v1558 = vpop.permute.xlu0 %1557
    %1561 = vrot.lane.b32.xlu0 %v1458, 64
    %v1562 = vpop.permute.xlu0 %1561
    %v1564 = vsel %vm230, %v1558, %v1562
    %v1566 = vsel %vm342, %v1564, 0
    %1568 = vmatprep.subr.mxu0 0.0
    %1569 = vmatpush1.msra.mxu0 %v56
    %1570 = vmatprep.subr.mxu0 0.0
    %1571 = vmatpush1.msra.mxu0 %v57
    %1572 = vmatprep.subr.mxu0 0.0
    %1573 = vmatpush1.msra.mxu0 %v58
    %1574 = vmatprep.subr.mxu0 0.0
    %1575 = vmatpush1.msra.mxu0 %v59
    %1576 = vmatprep.subr.mxu0 0.0
    %1577 = vmatpush1.msra.mxu0 %v60
    %1578 = vmatprep.subr.mxu0 0.0
    %1579 = vmatpush1.msra.mxu0 %v61
    %1580 = vmatprep.subr.mxu0 0.0
    %1581 = vmatpush1.msra.mxu0 %v62
    %1582 = vmatprep.subr.mxu0 0.0
    %1583 = vmatpush1.msra.mxu0 %v63
    %1584 = vmatprep.subr.mxu0 0.0
    %1585 = vmatpush1.msra.mxu0 0.0
    %1586 = vmatprep.subr.mxu0 0.0
    %1587 = vmatpush1.msra.mxu0 0.0
    %1588 = vmatprep.subr.mxu0 0.0
    %1589 = vmatpush1.msra.mxu0 0.0
    %1590 = vmatprep.subr.mxu0 0.0
    %1591 = vmatpush1.msra.mxu0 0.0
    %1592 = vmatprep.subr.mxu0 0.0
    %1593 = vmatpush1.msra.mxu0 0.0
    %1594 = vmatprep.subr.mxu0 0.0
    %1595 = vmatpush1.msra.mxu0 0.0
    %1596 = vmatprep.subr.mxu0 0.0
    %1597 = vmatpush1.msra.mxu0 0.0
    %1598 = vmatprep.subr.mxu0 0.0
    %1599 = vmatpush1.msra.mxu0 0.0
    %1600 = vmatprep.subr.mxu0 0.0
    %1601 = vmatpush1.msra.mxu0 0.0
    %1602 = vmatprep.subr.mxu0 0.0
    %1603 = vmatpush1.msra.mxu0 0.0
    %1604 = vmatprep.subr.mxu0 0.0
    %1605 = vmatpush1.msra.mxu0 0.0
    %1606 = vmatprep.subr.mxu0 0.0
    %1607 = vmatpush1.msra.mxu0 0.0
    %1608 = vmatprep.subr.mxu0 0.0
    %1609 = vmatpush1.msra.mxu0 0.0
    %1610 = vmatprep.subr.mxu0 0.0
    %1611 = vmatpush1.msra.mxu0 0.0
    %1612 = vmatprep.subr.mxu0 0.0
    %1613 = vmatpush1.msra.mxu0 0.0
    %1614 = vmatprep.subr.mxu0 0.0
    %1615 = vmatpush1.msra.mxu0 0.0
    %1616 = vmatprep.subr.mxu0 0.0
    %1617 = vmatpush1.msra.mxu0 0.0
    %1618 = vmatprep.subr.mxu0 0.0
    %1619 = vmatpush1.msra.mxu0 0.0
    %1620 = vmatprep.subr.mxu0 0.0
    %1621 = vmatpush1.msra.mxu0 0.0
    %1622 = vmatprep.subr.mxu0 0.0
    %1623 = vmatpush1.msra.mxu0 0.0
    %1624 = vmatprep.subr.mxu0 0.0
    %1625 = vmatpush1.msra.mxu0 0.0
    %1626 = vmatprep.subr.mxu0 0.0
    %1627 = vmatpush1.msra.mxu0 0.0
    %1628 = vmatprep.subr.mxu0 0.0
    %1629 = vmatpush1.msra.mxu0 0.0
    %1630 = vmatprep.subr.mxu0 0.0
    %1631 = vmatpush1.msra.mxu0 0.0
    %1632 = vmatprep.mubr.f32.mxu0 0.0
    %1633 = vmatmul.mubr.f32.gmra.mrb[0].mxu0 %v1566
    %v1634 = vpop.f32.mrb[0].mxu0
    %v1635 = vadd.f32 %v73, %v1634
    %v1636 = vpop.f32.mrb[0].mxu0
    %1637 = vdwg.mxu0
    %v1638 = vxor.u32 %v1635, 2147483648
    %v1639 = vmul.f32 %v1638, 1.442695
    %v1640 = vpow.pop %v1639
    %v1641 = vadd.f32 %v1640, 1.0
    %v1642 = vrcp.pop %v1641
    %v1643 = vmul.f32 1.0, %v1642
    %v1644 = vtanh.pop %v1635
    %v1645 = vmul.f32 %v1643, %v1452
    %1647 = vrot.lane.b32.xlu0 %v1644, 64
    %v1648 = vpop.permute.xlu0 %1647
    %v1650 = vmul.f32 %v1643, %v1648
    %1652 = vrot.lane.b32.xlu0 %v1650, 32
    %v1653 = vpop.permute.xlu0 %1652
    %v1655 = vadd.f32 %v1645, %v1653
    %v1656 = vtanh.pop %v1655
    %1658 = vrot.lane.b32.xlu0 %v1656, 64
    %v1659 = vpop.permute.xlu0 %1658
    %v1661 = vmul.f32 %v1643, %v1659
    %v1662 = vsel %vm230, %v1558, 0
    %1664 = vmatprep.subr.mxu0 0.0
    %1665 = vmatpush1.msra.mxu0 %v52
    %1666 = vmatprep.subr.mxu0 0.0
    %1667 = vmatpush1.msra.mxu0 %v53
    %1668 = vmatprep.subr.mxu0 0.0
    %1669 = vmatpush1.msra.mxu0 %v54
    %1670 = vmatprep.subr.mxu0 0.0
    %1671 = vmatpush1.msra.mxu0 %v55
    %1672 = vmatprep.subr.mxu0 0.0
    %1673 = vmatpush1.msra.mxu0 0.0
    %1674 = vmatprep.subr.mxu0 0.0
    %1675 = vmatpush1.msra.mxu0 0.0
    %1676 = vmatprep.subr.mxu0 0.0
    %1677 = vmatpush1.msra.mxu0 0.0
    %1678 = vmatprep.subr.mxu0 0.0
    %1679 = vmatpush1.msra.mxu0 0.0
    %1680 = vmatprep.subr.mxu0 0.0
    %1681 = vmatpush1.msra.mxu0 0.0
    %1682 = vmatprep.subr.mxu0 0.0
    %1683 = vmatpush1.msra.mxu0 0.0
    %1684 = vmatprep.subr.mxu0 0.0
    %1685 = vmatpush1.msra.mxu0 0.0
    %1686 = vmatprep.subr.mxu0 0.0
    %1687 = vmatpush1.msra.mxu0 0.0
    %1688 = vmatprep.subr.mxu0 0.0
    %1689 = vmatpush1.msra.mxu0 0.0
    %1690 = vmatprep.subr.mxu0 0.0
    %1691 = vmatpush1.msra.mxu0 0.0
    %1692 = vmatprep.subr.mxu0 0.0
    %1693 = vmatpush1.msra.mxu0 0.0
    %1694 = vmatprep.subr.mxu0 0.0
    %1695 = vmatpush1.msra.mxu0 0.0
    %1696 = vmatprep.subr.mxu0 0.0
    %1697 = vmatpush1.msra.mxu0 0.0
    %1698 = vmatprep.subr.mxu0 0.0
    %1699 = vmatpush1.msra.mxu0 0.0
    %1700 = vmatprep.subr.mxu0 0.0
    %1701 = vmatpush1.msra.mxu0 0.0
    %1702 = vmatprep.subr.mxu0 0.0
    %1703 = vmatpush1.msra.mxu0 0.0
    %1704 = vmatprep.subr.mxu0 0.0
    %1705 = vmatpush1.msra.mxu0 0.0
    %1706 = vmatprep.subr.mxu0 0.0
    %1707 = vmatpush1.msra.mxu0 0.0
    %1708 = vmatprep.subr.mxu0 0.0
    %1709 = vmatpush1.msra.mxu0 0.0
    %1710 = vmatprep.subr.mxu0 0.0
    %1711 = vmatpush1.msra.mxu0 0.0
    %1712 = vmatprep.subr.mxu0 0.0
    %1713 = vmatpush1.msra.mxu0 0.0
    %1714 = vmatprep.subr.mxu0 0.0
    %1715 = vmatpush1.msra.mxu0 0.0
    %1716 = vmatprep.subr.mxu0 0.0
    %1717 = vmatpush1.msra.mxu0 0.0
    %1718 = vmatprep.subr.mxu0 0.0
    %1719 = vmatpush1.msra.mxu0 0.0
    %1720 = vmatprep.subr.mxu0 0.0
    %1721 = vmatpush1.msra.mxu0 0.0
    %1722 = vmatprep.subr.mxu0 0.0
    %1723 = vmatpush1.msra.mxu0 0.0
    %1724 = vmatprep.subr.mxu0 0.0
    %1725 = vmatpush1.msra.mxu0 0.0
    %1726 = vmatprep.subr.mxu0 0.0
    %1727 = vmatpush1.msra.mxu0 0.0
    %1728 = vmatprep.mubr.f32.mxu0 0.0
    %1729 = vmatmul.mubr.f32.gmra.mrb[0].mxu0 %v1662
    %v1730 = vpop.f32.mrb[0].mxu0
    %v1731 = vadd.f32 0.0, %v1730
    %v1732 = vpop.f32.mrb[0].mxu0
    %1733 = vdwg.mxu0
    %v1734 = vadd.f32 %v221, %v1731
    %v1735 = vxor.u32 %v1734, 2147483648
    %v1736 = vmul.f32 %v1735, 1.442695
    %v1737 = vpow.pop %v1736
    %v1738 = vadd.f32 %v1737, 1.0
    %v1739 = vrcp.pop %v1738
    %v1740 = vmul.f32 1.0, %v1739
    %v1741 = vtanh.pop %v1734
    %v1742 = vmul.f32 %v1740, %v1549
    %1744 = vrot.lane.b32.xlu0 %v1741, 64
    %v1745 = vpop.permute.xlu0 %1744
    %v1747 = vmul.f32 %v1740, %v1745
    %1749 = vrot.lane.b32.xlu0 %v1747, 32
    %v1750 = vpop.permute.xlu0 %1749
    %v1752 = vadd.f32 %v1742, %v1750
    %v1753 = vtanh.pop %v1752
    %1755 = vrot.lane.b32.xlu0 %v1753, 64
    %v1756 = vpop.permute.xlu0 %1755
    %v1758 = vmul.f32 %v1740, %v1756
    %1760 = vrot.lane.b32.xlu0 %v1758, 32
    %v1761 = vpop.permute.xlu0 %1760
    %1764 = vrot.lane.b32.xlu0 %v1661, 64
    %v1765 = vpop.permute.xlu0 %1764
    %v1767 = vsel %vm230, %v1761, %v1765
    %v1769 = vsel %vm342, %v1767, 0
    %1771 = vmatprep.subr.mxu0 0.0
    %1772 = vmatpush1.msra.mxu0 %v56
    %1773 = vmatprep.subr.mxu0 0.0
    %1774 = vmatpush1.msra.mxu0 %v57
    %1775 = vmatprep.subr.mxu0 0.0
    %1776 = vmatpush1.msra.mxu0 %v58
    %1777 = vmatprep.subr.mxu0 0.0
    %1778 = vmatpush1.msra.mxu0 %v59
    %1779 = vmatprep.subr.mxu0 0.0
    %1780 = vmatpush1.msra.mxu0 %v60
    %1781 = vmatprep.subr.mxu0 0.0
    %1782 = vmatpush1.msra.mxu0 %v61
    %1783 = vmatprep.subr.mxu0 0.0
    %1784 = vmatpush1.msra.mxu0 %v62
    %1785 = vmatprep.subr.mxu0 0.0
    %1786 = vmatpush1.msra.mxu0 %v63
    %1787 = vmatprep.subr.mxu0 0.0
    %1788 = vmatpush1.msra.mxu0 0.0
    %1789 = vmatprep.subr.mxu0 0.0
    %1790 = vmatpush1.msra.mxu0 0.0
    %1791 = vmatprep.subr.mxu0 0.0
    %1792 = vmatpush1.msra.mxu0 0.0
    %1793 = vmatprep.subr.mxu0 0.0
    %1794 = vmatpush1.msra.mxu0 0.0
    %1795 = vmatprep.subr.mxu0 0.0
    %1796 = vmatpush1.msra.mxu0 0.0
    %1797 = vmatprep.subr.mxu0 0.0
    %1798 = vmatpush1.msra.mxu0 0.0
    %1799 = vmatprep.subr.mxu0 0.0
    %1800 = vmatpush1.msra.mxu0 0.0
    %1801 = vmatprep.subr.mxu0 0.0
    %1802 = vmatpush1.msra.mxu0 0.0
    %1803 = vmatprep.subr.mxu0 0.0
    %1804 = vmatpush1.msra.mxu0 0.0
    %1805 = vmatprep.subr.mxu0 0.0
    %1806 = vmatpush1.msra.mxu0 0.0
    %1807 = vmatprep.subr.mxu0 0.0
    %1808 = vmatpush1.msra.mxu0 0.0
    %1809 = vmatprep.subr.mxu0 0.0
    %1810 = vmatpush1.msra.mxu0 0.0
    %1811 = vmatprep.subr.mxu0 0.0
    %1812 = vmatpush1.msra.mxu0 0.0
    %1813 = vmatprep.subr.mxu0 0.0
    %1814 = vmatpush1.msra.mxu0 0.0
    %1815 = vmatprep.subr.mxu0 0.0
    %1816 = vmatpush1.msra.mxu0 0.0
    %1817 = vmatprep.subr.mxu0 0.0
    %1818 = vmatpush1.msra.mxu0 0.0
    %1819 = vmatprep.subr.mxu0 0.0
    %1820 = vmatpush1.msra.mxu0 0.0
    %1821 = vmatprep.subr.mxu0 0.0
    %1822 = vmatpush1.msra.mxu0 0.0
    %1823 = vmatprep.subr.mxu0 0.0
    %1824 = vmatpush1.msra.mxu0 0.0
    %1825 = vmatprep.subr.mxu0 0.0
    %1826 = vmatpush1.msra.mxu0 0.0
    %1827 = vmatprep.subr.mxu0 0.0
    %1828 = vmatpush1.msra.mxu0 0.0
    %1829 = vmatprep.subr.mxu0 0.0
    %1830 = vmatpush1.msra.mxu0 0.0
    %1831 = vmatprep.subr.mxu0 0.0
    %1832 = vmatpush1.msra.mxu0 0.0
    %1833 = vmatprep.subr.mxu0 0.0
    %1834 = vmatpush1.msra.mxu0 0.0
    %1835 = vmatprep.mubr.f32.mxu0 0.0
    %1836 = vmatmul.mubr.f32.gmra.mrb[0].mxu0 %v1769
    %v1837 = vpop.f32.mrb[0].mxu0
    %v1838 = vadd.f32 %v73, %v1837
    %v1839 = vpop.f32.mrb[0].mxu0
    %1840 = vdwg.mxu0
    %v1841 = vxor.u32 %v1838, 2147483648
    %v1842 = vmul.f32 %v1841, 1.442695
    %v1843 = vpow.pop %v1842
    %v1844 = vadd.f32 %v1843, 1.0
    %v1845 = vrcp.pop %v1844
    %v1846 = vmul.f32 1.0, %v1845
    %v1847 = vtanh.pop %v1838
    %v1848 = vmul.f32 %v1846, %v1655
    %1850 = vrot.lane.b32.xlu0 %v1847, 64
    %v1851 = vpop.permute.xlu0 %1850
    %v1853 = vmul.f32 %v1846, %v1851
    %1855 = vrot.lane.b32.xlu0 %v1853, 32
    %v1856 = vpop.permute.xlu0 %1855
    %v1858 = vadd.f32 %v1848, %v1856
    %v1859 = vtanh.pop %v1858
    %1861 = vrot.lane.b32.xlu0 %v1859, 64
    %v1862 = vpop.permute.xlu0 %1861
    %v1864 = vmul.f32 %v1846, %v1862
    %v1865 = vld [vmem:[#allocation2] sm:$0x1]
    %v1867 = vlaneseq
    %v1868 = vshrl.u32 %v1867, 7
    %v1869 = vsub.s32 0, %v1868
    %v1870 = vrot.slane %v1865, %v1869
    %1873 = vrot.lane.b32.xlu0 %v1864, 32
    %v1874 = vpop.permute.xlu0 %1873
    %v1875 = vsel %vm230, %v1874, 0
    %1877 = vmatprep.subr.mxu0 0.0
    %1878 = vmatpush1.msra.mxu0 %v64
    %1879 = vmatprep.subr.mxu0 0.0
    %1880 = vmatpush1.msra.mxu0 %v65
    %1881 = vmatprep.subr.mxu0 0.0
    %1882 = vmatpush1.msra.mxu0 %v66
    %1883 = vmatprep.subr.mxu0 0.0
    %1884 = vmatpush1.msra.mxu0 %v67
    %1885 = vmatprep.subr.mxu0 0.0
    %1886 = vmatpush1.msra.mxu0 0.0
    %1887 = vmatprep.subr.mxu0 0.0
    %1888 = vmatpush1.msra.mxu0 0.0
    %1889 = vmatprep.subr.mxu0 0.0
    %1890 = vmatpush1.msra.mxu0 0.0
    %1891 = vmatprep.subr.mxu0 0.0
    %1892 = vmatpush1.msra.mxu0 0.0
    %1893 = vmatprep.subr.mxu0 0.0
    %1894 = vmatpush1.msra.mxu0 0.0
    %1895 = vmatprep.subr.mxu0 0.0
    %1896 = vmatpush1.msra.mxu0 0.0
    %1897 = vmatprep.subr.mxu0 0.0
    %1898 = vmatpush1.msra.mxu0 0.0
    %1899 = vmatprep.subr.mxu0 0.0
    %1900 = vmatpush1.msra.mxu0 0.0
    %1901 = vmatprep.subr.mxu0 0.0
    %1902 = vmatpush1.msra.mxu0 0.0
    %1903 = vmatprep.subr.mxu0 0.0
    %1904 = vmatpush1.msra.mxu0 0.0
    %1905 = vmatprep.subr.mxu0 0.0
    %1906 = vmatpush1.msra.mxu0 0.0
    %1907 = vmatprep.subr.mxu0 0.0
    %1908 = vmatpush1.msra.mxu0 0.0
    %1909 = vmatprep.subr.mxu0 0.0
    %1910 = vmatpush1.msra.mxu0 0.0
    %1911 = vmatprep.subr.mxu0 0.0
    %1912 = vmatpush1.msra.mxu0 0.0
    %1913 = vmatprep.subr.mxu0 0.0
    %1914 = vmatpush1.msra.mxu0 0.0
    %1915 = vmatprep.subr.mxu0 0.0
    %1916 = vmatpush1.msra.mxu0 0.0
    %1917 = vmatprep.subr.mxu0 0.0
    %1918 = vmatpush1.msra.mxu0 0.0
    %1919 = vmatprep.subr.mxu0 0.0
    %1920 = vmatpush1.msra.mxu0 0.0
    %1921 = vmatprep.subr.mxu0 0.0
    %1922 = vmatpush1.msra.mxu0 0.0
    %1923 = vmatprep.subr.mxu0 0.0
    %1924 = vmatpush1.msra.mxu0 0.0
    %1925 = vmatprep.subr.mxu0 0.0
    %1926 = vmatpush1.msra.mxu0 0.0
    %1927 = vmatprep.subr.mxu0 0.0
    %1928 = vmatpush1.msra.mxu0 0.0
    %1929 = vmatprep.subr.mxu0 0.0
    %1930 = vmatpush1.msra.mxu0 0.0
    %1931 = vmatprep.subr.mxu0 0.0
    %1932 = vmatpush1.msra.mxu0 0.0
    %1933 = vmatprep.subr.mxu0 0.0
    %1934 = vmatpush1.msra.mxu0 0.0
    %1935 = vmatprep.subr.mxu0 0.0
    %1936 = vmatpush1.msra.mxu0 0.0
    %1937 = vmatprep.subr.mxu0 0.0
    %1938 = vmatpush1.msra.mxu0 0.0
    %1939 = vmatprep.subr.mxu0 0.0
    %1940 = vmatpush1.msra.mxu0 0.0
    %1941 = vmatprep.mubr.f32.mxu0 0.0
    %1942 = vmatmul.mubr.f32.gmra.mrb[0].mxu0 %v1875
    %v1943 = vpop.f32.mrb[0].mxu0
    %v1944 = vadd.f32 %v1870, %v1943
    %v1945 = vpop.f32.mrb[0].mxu0
    %1946 = vdwg.mxu0
    %vm1947 = vcmask 7168
    %1948 = vst.msk [vmem:[%s10] sm:$0xff] %vm1947, %v1944
    // Predicated region
    $region46: #{tpu_custom_call.1} parent=1 // pred_check
      _
    $region47: #{tpu_custom_call.1} parent=1 // pred_check_branch
      %1950 = sbr.rel (0) target = $region49
    $region48: #{tpu_custom_call.1} parent=1 // pred_region
      _
    $region49: #{tpu_custom_call.1} parent=1 // pred_fallthru
      _
    // Predicated region
    $region50: #{tpu_custom_call.1} parent=1 // pred_check
      _
    $region51: #{tpu_custom_call.1} parent=1 // pred_check_branch
      %1952 = sbr.rel (0) target = $region53
    $region52: #{tpu_custom_call.1} parent=1 // pred_region
      _
    $region53: #{tpu_custom_call.1} parent=1 // pred_fallthru
      _
    %1953 = vsyncpa [#allocation4], 1

</llo_original>
